<compile_context>
chip_gen: v6e
topology: v6e:2x2x1
jax: 0.10.0
libtpu: 0.0.40
codegen_flags: <defaults>
</compile_context>

<pallas_src>
import jax
import jax.numpy as jnp
from jax.experimental import pallas as pl
from jax.experimental.pallas import tpu as pltpu

KERNEL_SIZE = 7
PAD = 3


def _sa_enhance_kernel(x_ref, w_ref, o_ref, m_ref, mp_ref):
    # x_ref : (1, CB, H, W)  VMEM  -- CB channels of batch n (unpadded)
    # w_ref : (7, 7)         SMEM  -- conv taps (scalar reads)
    # o_ref : (1, 1, H, W)   VMEM  -- sigmoid(conv7x7(max_c x))
    # m_ref : (H, W)         VMEM scratch -- running channel max (f32)
    # mp_ref: (H+6, W+6)     VMEM scratch -- zero-padded max for the conv
    H = o_ref.shape[2]
    W = o_ref.shape[3]
    cb = pl.program_id(1)
    num_cb = pl.num_programs(1)

    # Max over the CB channels of this block (elementwise across slabs; VPU).
    xm = jnp.max(x_ref[0].astype(jnp.float32), axis=0)  # (H, W)

    @pl.when(cb == 0)
    def _():
        m_ref[...] = xm

    @pl.when(cb != 0)
    def _():
        m_ref[...] = jnp.maximum(m_ref[...], xm)

    @pl.when(cb == num_cb - 1)
    def _():
        # Zero-pad the channel max; halo == 0 matches conv2d's zero padding
        # of max_out (the channel max can be negative, so the halo must be 0,
        # not -inf).
        mp_ref[...] = jnp.zeros_like(mp_ref)
        mp_ref[PAD:PAD + H, PAD:PAD + W] = m_ref[...]
        mp = mp_ref[...]

        # Hoist all 49 SMEM scalar reads out of the MAC loop.
        w = [[w_ref[i, j] for j in range(KERNEL_SIZE)]
             for i in range(KERNEL_SIZE)]

        # Hoist the 7 lane-direction shifts; only sublane slices remain inside.
        cols = [mp[:, dj:dj + W] for dj in range(KERNEL_SIZE)]  # 7 x (H+6, W)

        # 7 independent partial accumulators (one per kernel row) -> ILP.
        parts = []
        for di in range(KERNEL_SIZE):
            p = w[di][0] * cols[0][di:di + H, :]
            for dj in range(1, KERNEL_SIZE):
                p = p + w[di][dj] * cols[dj][di:di + H, :]
            parts.append(p)
        acc = ((parts[0] + parts[1]) + (parts[2] + parts[3])
               + ((parts[4] + parts[5]) + parts[6]))

        o_ref[0, 0] = jax.nn.sigmoid(acc).astype(o_ref.dtype)


def _pick_channel_block(C, H, W, itemsize, budget_bytes=8 * 1024 * 1024):
    """Largest divisor of C whose (CB, H, W) slab fits the block budget."""
    per_ch = H * W * itemsize
    cb_max = max(1, budget_bytes // per_ch)
    cb = 1
    for d in range(1, C + 1):
        if C % d == 0 and d <= cb_max:
            cb = d
    return cb


def sa_enhance(x, weight):
    """x: (N, C, H, W), weight: (7, 7) -> sigmoid(conv7x7(max_c x)): (N,1,H,W)."""
    N, C, H, W = x.shape
    Hp, Wp = H + 2 * PAD, W + 2 * PAD
    itemsize = jnp.dtype(x.dtype).itemsize

    CB = _pick_channel_block(C, H, W, itemsize)

    # VMEM budget: double-buffered (1,CB,H,W) input and (1,1,H,W) output blocks
    # plus the two scratch slabs, with 2x headroom, clamped to fit v7x (64 MiB).
    in_block = CB * H * W * itemsize
    out_block = H * W * itemsize
    scratch_bytes = (H * W + Hp * Wp) * 4
    needed = 2 * in_block + 2 * out_block + scratch_bytes
    vmem_limit = int(min(max(2 * needed, 16 * 1024 * 1024), 64 * 1024 * 1024))

    return pl.pallas_call(
        _sa_enhance_kernel,
        out_shape=jax.ShapeDtypeStruct((N, 1, H, W), x.dtype),
        grid_spec=pltpu.PrefetchScalarGridSpec(
            num_scalar_prefetch=0,
            grid=(N, C // CB),                   # channel blocks last = reduction axis
            in_specs=[
                pl.BlockSpec((1, CB, H, W), lambda n, c: (n, c, 0, 0)),
                pl.BlockSpec(memory_space=pltpu.MemorySpace.SMEM),
            ],
            out_specs=pl.BlockSpec((1, 1, H, W), lambda n, c: (n, 0, 0, 0)),
            scratch_shapes=[
                pltpu.VMEM((H, W), jnp.float32),     # running channel max
                pltpu.VMEM((Hp, Wp), jnp.float32),   # zero-padded max
            ],
        ),
        compiler_params=pltpu.CompilerParams(
            dimension_semantics=("parallel", "arbitrary"),
            vmem_limit_bytes=vmem_limit,
        ),
    )(x, weight)


def sa_enhance_ref(x, weight):
    """Pure-JAX reference (mirrors the PyTorch forward)."""
    m = jnp.max(x, axis=1, keepdims=True)                      # (N,1,H,W)
    mp = jnp.pad(m, ((0, 0), (0, 0), (PAD, PAD), (PAD, PAD)))
    N, _, H, W = x.shape
    acc = jnp.zeros((N, 1, H, W), jnp.float32)
    for di in range(KERNEL_SIZE):
        for dj in range(KERNEL_SIZE):
            acc = acc + weight[di, dj] * mp[:, :, di:di + H, dj:dj + W]
    return jax.nn.sigmoid(acc)


if __name__ == "__main__":
    key = jax.random.PRNGKey(0)
    kx, kw = jax.random.split(key)

    N, C, H, W = 2, 4, 16, 16
    x = jax.random.normal(kx, (N, C, H, W), dtype=jnp.float32)

    # Deterministic conv1 weight init (Conv2d(1,1,7,7,bias=False) -> (7,7) taps).
    fan_in = 1 * KERNEL_SIZE * KERNEL_SIZE
    weight = (jax.random.uniform(kw, (KERNEL_SIZE, KERNEL_SIZE),
                                 dtype=jnp.float32, minval=-1.0, maxval=1.0)
              / jnp.sqrt(jnp.float32(fan_in)))

    out = sa_enhance(x, weight)
    out = jax.block_until_ready(out)

    ref = sa_enhance_ref(x, weight)
    assert out.shape == (N, 1, H, W)
    assert jnp.allclose(out, ref, atol=1e-5, rtol=1e-5)

    print("KERNEL_OK")
</pallas_src>

<mosaic_0001>
module attributes {stable_mosaic.version = 11 : i64} {
  func.func @_sa_enhance_kernel(%arg0: i32, %arg1: i32, %arg2: memref<1x4x16x16xf32, #tpu.memory_space<vmem>>, %arg3: memref<7x7xf32, #tpu.memory_space<smem>>, %arg4: memref<1x1x16x16xf32, #tpu.memory_space<vmem>>, %arg5: memref<16x16xf32, #tpu.memory_space<vmem>>, %arg6: memref<22x22xf32, #tpu.memory_space<vmem>>) attributes {dimension_semantics = [#tpu.dimension_semantics<parallel>, #tpu.dimension_semantics<arbitrary>], iteration_bounds = array<i64: 2, 1>, scalar_prefetch = 0 : i64, scratch_operands = 2 : i64, tpu.core_type = #tpu.core_type<tc>, window_params = [{transform_indices = @transform_0, window_bounds = array<i64: 1, 4, 16, 16>}, {transform_indices = @transform_1, window_bounds = array<i64: 7, 7>}, {transform_indices = @transform_2, window_bounds = array<i64: 1, 1, 16, 16>}]} {
    %c0 = arith.constant 0 : index
    %c0_0 = arith.constant 0 : index
    %c0_1 = arith.constant 0 : index
    %c0_2 = arith.constant 0 : index
    %0 = vector.load %arg2[%c0, %c0_0, %c0_1, %c0_2] : memref<1x4x16x16xf32, #tpu.memory_space<vmem>>, vector<1x4x16x16xf32>
    %1 = vector.shape_cast %0 : vector<1x4x16x16xf32> to vector<4x16x16xf32>
    %cst = arith.constant dense<0xFF800000> : vector<16x16xf32>
    %2 = vector.multi_reduction <maximumf>, %1, %cst [0] : vector<4x16x16xf32> to vector<16x16xf32>
    %c0_i32 = arith.constant 0 : i32
    %3 = arith.cmpi eq, %arg1, %c0_i32 : i32
    %4 = arith.extui %3 : i1 to i32
    %c0_i32_3 = arith.constant 0 : i32
    %5 = arith.cmpi ne, %4, %c0_i32_3 : i32
    scf.if %5 {
      %c0_8 = arith.constant 0 : index
      %c0_9 = arith.constant 0 : index
      %12 = vector.load %arg5[%c0_8, %c0_9] : memref<16x16xf32, #tpu.memory_space<vmem>>, vector<16x16xf32>
      tpu.vector_store %arg5[%c0_8, %c0_9], %2 {strides = array<i32>} : memref<16x16xf32, #tpu.memory_space<vmem>>, vector<16x16xf32>,
    } else {
    }
    %c0_i32_4 = arith.constant 0 : i32
    %6 = arith.cmpi ne, %arg1, %c0_i32_4 : i32
    %7 = arith.extui %6 : i1 to i32
    %c0_i32_5 = arith.constant 0 : i32
    %8 = arith.cmpi ne, %7, %c0_i32_5 : i32
    scf.if %8 {
      %c0_8 = arith.constant 0 : index
      %c0_9 = arith.constant 0 : index
      %12 = vector.load %arg5[%c0_8, %c0_9] : memref<16x16xf32, #tpu.memory_space<vmem>>, vector<16x16xf32>
      %13 = arith.maximumf %12, %2 : vector<16x16xf32>
      %c0_10 = arith.constant 0 : index
      %c0_11 = arith.constant 0 : index
      %14 = vector.load %arg5[%c0_10, %c0_11] : memref<16x16xf32, #tpu.memory_space<vmem>>, vector<16x16xf32>
      tpu.vector_store %arg5[%c0_10, %c0_11], %13 {strides = array<i32>} : memref<16x16xf32, #tpu.memory_space<vmem>>, vector<16x16xf32>,
    } else {
    }
    %c0_i32_6 = arith.constant 0 : i32
    %9 = arith.cmpi eq, %arg1, %c0_i32_6 : i32
    %10 = arith.extui %9 : i1 to i32
    %c0_i32_7 = arith.constant 0 : i32
    %11 = arith.cmpi ne, %10, %c0_i32_7 : i32
    scf.if %11 {
      %cst_8 = arith.constant 0.000000e+00 : f32
      %12 = vector.broadcast %cst_8 : f32 to vector<22x22xf32>
      %c0_9 = arith.constant 0 : index
      %c0_10 = arith.constant 0 : index
      %13 = vector.load %arg6[%c0_9, %c0_10] : memref<22x22xf32, #tpu.memory_space<vmem>>, vector<22x22xf32>
      tpu.vector_store %arg6[%c0_9, %c0_10], %12 {strides = array<i32>} : memref<22x22xf32, #tpu.memory_space<vmem>>, vector<22x22xf32>,
      %c0_11 = arith.constant 0 : index
      %c0_12 = arith.constant 0 : index
      %14 = vector.load %arg5[%c0_11, %c0_12] : memref<16x16xf32, #tpu.memory_space<vmem>>, vector<16x16xf32>
      %c3 = arith.constant 3 : index
      %c3_13 = arith.constant 3 : index
      %15 = vector.load %arg6[%c3, %c3_13] : memref<22x22xf32, #tpu.memory_space<vmem>>, vector<16x16xf32>
      tpu.vector_store %arg6[%c3, %c3_13], %14 {strides = array<i32>} : memref<22x22xf32, #tpu.memory_space<vmem>>, vector<16x16xf32>,
      %c0_14 = arith.constant 0 : index
      %c0_15 = arith.constant 0 : index
      %16 = vector.load %arg6[%c0_14, %c0_15] : memref<22x22xf32, #tpu.memory_space<vmem>>, vector<22x22xf32>
      %c0_16 = arith.constant 0 : index
      %c0_17 = arith.constant 0 : index
      %17 = memref.load %arg3[%c0_16, %c0_17] : memref<7x7xf32, #tpu.memory_space<smem>>
      %c0_18 = arith.constant 0 : index
      %c1 = arith.constant 1 : index
      %18 = memref.load %arg3[%c0_18, %c1] : memref<7x7xf32, #tpu.memory_space<smem>>
      %c0_19 = arith.constant 0 : index
      %c2 = arith.constant 2 : index
      %19 = memref.load %arg3[%c0_19, %c2] : memref<7x7xf32, #tpu.memory_space<smem>>
      %c0_20 = arith.constant 0 : index
      %c3_21 = arith.constant 3 : index
      %20 = memref.load %arg3[%c0_20, %c3_21] : memref<7x7xf32, #tpu.memory_space<smem>>
      %c0_22 = arith.constant 0 : index
      %c4 = arith.constant 4 : index
      %21 = memref.load %arg3[%c0_22, %c4] : memref<7x7xf32, #tpu.memory_space<smem>>
      %c0_23 = arith.constant 0 : index
      %c5 = arith.constant 5 : index
      %22 = memref.load %arg3[%c0_23, %c5] : memref<7x7xf32, #tpu.memory_space<smem>>
      %c0_24 = arith.constant 0 : index
      %c6 = arith.constant 6 : index
      %23 = memref.load %arg3[%c0_24, %c6] : memref<7x7xf32, #tpu.memory_space<smem>>
      %c1_25 = arith.constant 1 : index
      %c0_26 = arith.constant 0 : index
      %24 = memref.load %arg3[%c1_25, %c0_26] : memref<7x7xf32, #tpu.memory_space<smem>>
      %c1_27 = arith.constant 1 : index
      %c1_28 = arith.constant 1 : index
      %25 = memref.load %arg3[%c1_27, %c1_28] : memref<7x7xf32, #tpu.memory_space<smem>>
      %c1_29 = arith.constant 1 : index
      %c2_30 = arith.constant 2 : index
      %26 = memref.load %arg3[%c1_29, %c2_30] : memref<7x7xf32, #tpu.memory_space<smem>>
      %c1_31 = arith.constant 1 : index
      %c3_32 = arith.constant 3 : index
      %27 = memref.load %arg3[%c1_31, %c3_32] : memref<7x7xf32, #tpu.memory_space<smem>>
      %c1_33 = arith.constant 1 : index
      %c4_34 = arith.constant 4 : index
      %28 = memref.load %arg3[%c1_33, %c4_34] : memref<7x7xf32, #tpu.memory_space<smem>>
      %c1_35 = arith.constant 1 : index
      %c5_36 = arith.constant 5 : index
      %29 = memref.load %arg3[%c1_35, %c5_36] : memref<7x7xf32, #tpu.memory_space<smem>>
      %c1_37 = arith.constant 1 : index
      %c6_38 = arith.constant 6 : index
      %30 = memref.load %arg3[%c1_37, %c6_38] : memref<7x7xf32, #tpu.memory_space<smem>>
      %c2_39 = arith.constant 2 : index
      %c0_40 = arith.constant 0 : index
      %31 = memref.load %arg3[%c2_39, %c0_40] : memref<7x7xf32, #tpu.memory_space<smem>>
      %c2_41 = arith.constant 2 : index
      %c1_42 = arith.constant 1 : index
      %32 = memref.load %arg3[%c2_41, %c1_42] : memref<7x7xf32, #tpu.memory_space<smem>>
      %c2_43 = arith.constant 2 : index
      %c2_44 = arith.constant 2 : index
      %33 = memref.load %arg3[%c2_43, %c2_44] : memref<7x7xf32, #tpu.memory_space<smem>>
      %c2_45 = arith.constant 2 : index
      %c3_46 = arith.constant 3 : index
      %34 = memref.load %arg3[%c2_45, %c3_46] : memref<7x7xf32, #tpu.memory_space<smem>>
      %c2_47 = arith.constant 2 : index
      %c4_48 = arith.constant 4 : index
      %35 = memref.load %arg3[%c2_47, %c4_48] : memref<7x7xf32, #tpu.memory_space<smem>>
      %c2_49 = arith.constant 2 : index
      %c5_50 = arith.constant 5 : index
      %36 = memref.load %arg3[%c2_49, %c5_50] : memref<7x7xf32, #tpu.memory_space<smem>>
      %c2_51 = arith.constant 2 : index
      %c6_52 = arith.constant 6 : index
      %37 = memref.load %arg3[%c2_51, %c6_52] : memref<7x7xf32, #tpu.memory_space<smem>>
      %c3_53 = arith.constant 3 : index
      %c0_54 = arith.constant 0 : index
      %38 = memref.load %arg3[%c3_53, %c0_54] : memref<7x7xf32, #tpu.memory_space<smem>>
      %c3_55 = arith.constant 3 : index
      %c1_56 = arith.constant 1 : index
      %39 = memref.load %arg3[%c3_55, %c1_56] : memref<7x7xf32, #tpu.memory_space<smem>>
      %c3_57 = arith.constant 3 : index
      %c2_58 = arith.constant 2 : index
      %40 = memref.load %arg3[%c3_57, %c2_58] : memref<7x7xf32, #tpu.memory_space<smem>>
      %c3_59 = arith.constant 3 : index
      %c3_60 = arith.constant 3 : index
      %41 = memref.load %arg3[%c3_59, %c3_60] : memref<7x7xf32, #tpu.memory_space<smem>>
      %c3_61 = arith.constant 3 : index
      %c4_62 = arith.constant 4 : index
      %42 = memref.load %arg3[%c3_61, %c4_62] : memref<7x7xf32, #tpu.memory_space<smem>>
      %c3_63 = arith.constant 3 : index
      %c5_64 = arith.constant 5 : index
      %43 = memref.load %arg3[%c3_63, %c5_64] : memref<7x7xf32, #tpu.memory_space<smem>>
      %c3_65 = arith.constant 3 : index
      %c6_66 = arith.constant 6 : index
      %44 = memref.load %arg3[%c3_65, %c6_66] : memref<7x7xf32, #tpu.memory_space<smem>>
      %c4_67 = arith.constant 4 : index
      %c0_68 = arith.constant 0 : index
      %45 = memref.load %arg3[%c4_67, %c0_68] : memref<7x7xf32, #tpu.memory_space<smem>>
      %c4_69 = arith.constant 4 : index
      %c1_70 = arith.constant 1 : index
      %46 = memref.load %arg3[%c4_69, %c1_70] : memref<7x7xf32, #tpu.memory_space<smem>>
      %c4_71 = arith.constant 4 : index
      %c2_72 = arith.constant 2 : index
      %47 = memref.load %arg3[%c4_71, %c2_72] : memref<7x7xf32, #tpu.memory_space<smem>>
      %c4_73 = arith.constant 4 : index
      %c3_74 = arith.constant 3 : index
      %48 = memref.load %arg3[%c4_73, %c3_74] : memref<7x7xf32, #tpu.memory_space<smem>>
      %c4_75 = arith.constant 4 : index
      %c4_76 = arith.constant 4 : index
      %49 = memref.load %arg3[%c4_75, %c4_76] : memref<7x7xf32, #tpu.memory_space<smem>>
      %c4_77 = arith.constant 4 : index
      %c5_78 = arith.constant 5 : index
      %50 = memref.load %arg3[%c4_77, %c5_78] : memref<7x7xf32, #tpu.memory_space<smem>>
      %c4_79 = arith.constant 4 : index
      %c6_80 = arith.constant 6 : index
      %51 = memref.load %arg3[%c4_79, %c6_80] : memref<7x7xf32, #tpu.memory_space<smem>>
      %c5_81 = arith.constant 5 : index
      %c0_82 = arith.constant 0 : index
      %52 = memref.load %arg3[%c5_81, %c0_82] : memref<7x7xf32, #tpu.memory_space<smem>>
      %c5_83 = arith.constant 5 : index
      %c1_84 = arith.constant 1 : index
      %53 = memref.load %arg3[%c5_83, %c1_84] : memref<7x7xf32, #tpu.memory_space<smem>>
      %c5_85 = arith.constant 5 : index
      %c2_86 = arith.constant 2 : index
      %54 = memref.load %arg3[%c5_85, %c2_86] : memref<7x7xf32, #tpu.memory_space<smem>>
      %c5_87 = arith.constant 5 : index
      %c3_88 = arith.constant 3 : index
      %55 = memref.load %arg3[%c5_87, %c3_88] : memref<7x7xf32, #tpu.memory_space<smem>>
      %c5_89 = arith.constant 5 : index
      %c4_90 = arith.constant 4 : index
      %56 = memref.load %arg3[%c5_89, %c4_90] : memref<7x7xf32, #tpu.memory_space<smem>>
      %c5_91 = arith.constant 5 : index
      %c5_92 = arith.constant 5 : index
      %57 = memref.load %arg3[%c5_91, %c5_92] : memref<7x7xf32, #tpu.memory_space<smem>>
      %c5_93 = arith.constant 5 : index
      %c6_94 = arith.constant 6 : index
      %58 = memref.load %arg3[%c5_93, %c6_94] : memref<7x7xf32, #tpu.memory_space<smem>>
      %c6_95 = arith.constant 6 : index
      %c0_96 = arith.constant 0 : index
      %59 = memref.load %arg3[%c6_95, %c0_96] : memref<7x7xf32, #tpu.memory_space<smem>>
      %c6_97 = arith.constant 6 : index
      %c1_98 = arith.constant 1 : index
      %60 = memref.load %arg3[%c6_97, %c1_98] : memref<7x7xf32, #tpu.memory_space<smem>>
      %c6_99 = arith.constant 6 : index
      %c2_100 = arith.constant 2 : index
      %61 = memref.load %arg3[%c6_99, %c2_100] : memref<7x7xf32, #tpu.memory_space<smem>>
      %c6_101 = arith.constant 6 : index
      %c3_102 = arith.constant 3 : index
      %62 = memref.load %arg3[%c6_101, %c3_102] : memref<7x7xf32, #tpu.memory_space<smem>>
      %c6_103 = arith.constant 6 : index
      %c4_104 = arith.constant 4 : index
      %63 = memref.load %arg3[%c6_103, %c4_104] : memref<7x7xf32, #tpu.memory_space<smem>>
      %c6_105 = arith.constant 6 : index
      %c5_106 = arith.constant 5 : index
      %64 = memref.load %arg3[%c6_105, %c5_106] : memref<7x7xf32, #tpu.memory_space<smem>>
      %c6_107 = arith.constant 6 : index
      %c6_108 = arith.constant 6 : index
      %65 = memref.load %arg3[%c6_107, %c6_108] : memref<7x7xf32, #tpu.memory_space<smem>>
      %66 = vector.extract_strided_slice %16 {offsets = [0, 0], sizes = [22, 16], strides = [1, 1]} : vector<22x22xf32> to vector<22x16xf32>
      %67 = vector.extract_strided_slice %16 {offsets = [0, 1], sizes = [22, 16], strides = [1, 1]} : vector<22x22xf32> to vector<22x16xf32>
      %68 = vector.extract_strided_slice %16 {offsets = [0, 2], sizes = [22, 16], strides = [1, 1]} : vector<22x22xf32> to vector<22x16xf32>
      %69 = vector.extract_strided_slice %16 {offsets = [0, 3], sizes = [22, 16], strides = [1, 1]} : vector<22x22xf32> to vector<22x16xf32>
      %70 = vector.extract_strided_slice %16 {offsets = [0, 4], sizes = [22, 16], strides = [1, 1]} : vector<22x22xf32> to vector<22x16xf32>
      %71 = vector.extract_strided_slice %16 {offsets = [0, 5], sizes = [22, 16], strides = [1, 1]} : vector<22x22xf32> to vector<22x16xf32>
      %72 = vector.extract_strided_slice %16 {offsets = [0, 6], sizes = [22, 16], strides = [1, 1]} : vector<22x22xf32> to vector<22x16xf32>
      %73 = vector.extract_strided_slice %66 {offsets = [0, 0], sizes = [16, 16], strides = [1, 1]} : vector<22x16xf32> to vector<16x16xf32>
      %74 = vector.broadcast %17 : f32 to vector<16x16xf32>
      %75 = arith.mulf %74, %73 : vector<16x16xf32>
      %76 = vector.extract_strided_slice %67 {offsets = [0, 0], sizes = [16, 16], strides = [1, 1]} : vector<22x16xf32> to vector<16x16xf32>
      %77 = vector.broadcast %18 : f32 to vector<16x16xf32>
      %78 = arith.mulf %77, %76 : vector<16x16xf32>
      %79 = arith.addf %75, %78 : vector<16x16xf32>
      %80 = vector.extract_strided_slice %68 {offsets = [0, 0], sizes = [16, 16], strides = [1, 1]} : vector<22x16xf32> to vector<16x16xf32>
      %81 = vector.broadcast %19 : f32 to vector<16x16xf32>
      %82 = arith.mulf %81, %80 : vector<16x16xf32>
      %83 = arith.addf %79, %82 : vector<16x16xf32>
      %84 = vector.extract_strided_slice %69 {offsets = [0, 0], sizes = [16, 16], strides = [1, 1]} : vector<22x16xf32> to vector<16x16xf32>
      %85 = vector.broadcast %20 : f32 to vector<16x16xf32>
      %86 = arith.mulf %85, %84 : vector<16x16xf32>
      %87 = arith.addf %83, %86 : vector<16x16xf32>
      %88 = vector.extract_strided_slice %70 {offsets = [0, 0], sizes = [16, 16], strides = [1, 1]} : vector<22x16xf32> to vector<16x16xf32>
      %89 = vector.broadcast %21 : f32 to vector<16x16xf32>
      %90 = arith.mulf %89, %88 : vector<16x16xf32>
      %91 = arith.addf %87, %90 : vector<16x16xf32>
      %92 = vector.extract_strided_slice %71 {offsets = [0, 0], sizes = [16, 16], strides = [1, 1]} : vector<22x16xf32> to vector<16x16xf32>
      %93 = vector.broadcast %22 : f32 to vector<16x16xf32>
      %94 = arith.mulf %93, %92 : vector<16x16xf32>
      %95 = arith.addf %91, %94 : vector<16x16xf32>
      %96 = vector.extract_strided_slice %72 {offsets = [0, 0], sizes = [16, 16], strides = [1, 1]} : vector<22x16xf32> to vector<16x16xf32>
      %97 = vector.broadcast %23 : f32 to vector<16x16xf32>
      %98 = arith.mulf %97, %96 : vector<16x16xf32>
      %99 = arith.addf %95, %98 : vector<16x16xf32>
      %100 = vector.extract_strided_slice %66 {offsets = [1, 0], sizes = [16, 16], strides = [1, 1]} : vector<22x16xf32> to vector<16x16xf32>
      %101 = vector.broadcast %24 : f32 to vector<16x16xf32>
      %102 = arith.mulf %101, %100 : vector<16x16xf32>
      %103 = vector.extract_strided_slice %67 {offsets = [1, 0], sizes = [16, 16], strides = [1, 1]} : vector<22x16xf32> to vector<16x16xf32>
      %104 = vector.broadcast %25 : f32 to vector<16x16xf32>
      %105 = arith.mulf %104, %103 : vector<16x16xf32>
      %106 = arith.addf %102, %105 : vector<16x16xf32>
      %107 = vector.extract_strided_slice %68 {offsets = [1, 0], sizes = [16, 16], strides = [1, 1]} : vector<22x16xf32> to vector<16x16xf32>
      %108 = vector.broadcast %26 : f32 to vector<16x16xf32>
      %109 = arith.mulf %108, %107 : vector<16x16xf32>
      %110 = arith.addf %106, %109 : vector<16x16xf32>
      %111 = vector.extract_strided_slice %69 {offsets = [1, 0], sizes = [16, 16], strides = [1, 1]} : vector<22x16xf32> to vector<16x16xf32>
      %112 = vector.broadcast %27 : f32 to vector<16x16xf32>
      %113 = arith.mulf %112, %111 : vector<16x16xf32>
      %114 = arith.addf %110, %113 : vector<16x16xf32>
      %115 = vector.extract_strided_slice %70 {offsets = [1, 0], sizes = [16, 16], strides = [1, 1]} : vector<22x16xf32> to vector<16x16xf32>
      %116 = vector.broadcast %28 : f32 to vector<16x16xf32>
      %117 = arith.mulf %116, %115 : vector<16x16xf32>
      %118 = arith.addf %114, %117 : vector<16x16xf32>
      %119 = vector.extract_strided_slice %71 {offsets = [1, 0], sizes = [16, 16], strides = [1, 1]} : vector<22x16xf32> to vector<16x16xf32>
      %120 = vector.broadcast %29 : f32 to vector<16x16xf32>
      %121 = arith.mulf %120, %119 : vector<16x16xf32>
      %122 = arith.addf %118, %121 : vector<16x16xf32>
      %123 = vector.extract_strided_slice %72 {offsets = [1, 0], sizes = [16, 16], strides = [1, 1]} : vector<22x16xf32> to vector<16x16xf32>
      %124 = vector.broadcast %30 : f32 to vector<16x16xf32>
      %125 = arith.mulf %124, %123 : vector<16x16xf32>
      %126 = arith.addf %122, %125 : vector<16x16xf32>
      %127 = vector.extract_strided_slice %66 {offsets = [2, 0], sizes = [16, 16], strides = [1, 1]} : vector<22x16xf32> to vector<16x16xf32>
      %128 = vector.broadcast %31 : f32 to vector<16x16xf32>
      %129 = arith.mulf %128, %127 : vector<16x16xf32>
      %130 = vector.extract_strided_slice %67 {offsets = [2, 0], sizes = [16, 16], strides = [1, 1]} : vector<22x16xf32> to vector<16x16xf32>
      %131 = vector.broadcast %32 : f32 to vector<16x16xf32>
      %132 = arith.mulf %131, %130 : vector<16x16xf32>
      %133 = arith.addf %129, %132 : vector<16x16xf32>
      %134 = vector.extract_strided_slice %68 {offsets = [2, 0], sizes = [16, 16], strides = [1, 1]} : vector<22x16xf32> to vector<16x16xf32>
      %135 = vector.broadcast %33 : f32 to vector<16x16xf32>
      %136 = arith.mulf %135, %134 : vector<16x16xf32>
      %137 = arith.addf %133, %136 : vector<16x16xf32>
      %138 = vector.extract_strided_slice %69 {offsets = [2, 0], sizes = [16, 16], strides = [1, 1]} : vector<22x16xf32> to vector<16x16xf32>
      %139 = vector.broadcast %34 : f32 to vector<16x16xf32>
      %140 = arith.mulf %139, %138 : vector<16x16xf32>
      %141 = arith.addf %137, %140 : vector<16x16xf32>
      %142 = vector.extract_strided_slice %70 {offsets = [2, 0], sizes = [16, 16], strides = [1, 1]} : vector<22x16xf32> to vector<16x16xf32>
      %143 = vector.broadcast %35 : f32 to vector<16x16xf32>
      %144 = arith.mulf %143, %142 : vector<16x16xf32>
      %145 = arith.addf %141, %144 : vector<16x16xf32>
      %146 = vector.extract_strided_slice %71 {offsets = [2, 0], sizes = [16, 16], strides = [1, 1]} : vector<22x16xf32> to vector<16x16xf32>
      %147 = vector.broadcast %36 : f32 to vector<16x16xf32>
      %148 = arith.mulf %147, %146 : vector<16x16xf32>
      %149 = arith.addf %145, %148 : vector<16x16xf32>
      %150 = vector.extract_strided_slice %72 {offsets = [2, 0], sizes = [16, 16], strides = [1, 1]} : vector<22x16xf32> to vector<16x16xf32>
      %151 = vector.broadcast %37 : f32 to vector<16x16xf32>
      %152 = arith.mulf %151, %150 : vector<16x16xf32>
      %153 = arith.addf %149, %152 : vector<16x16xf32>
      %154 = vector.extract_strided_slice %66 {offsets = [3, 0], sizes = [16, 16], strides = [1, 1]} : vector<22x16xf32> to vector<16x16xf32>
      %155 = vector.broadcast %38 : f32 to vector<16x16xf32>
      %156 = arith.mulf %155, %154 : vector<16x16xf32>
      %157 = vector.extract_strided_slice %67 {offsets = [3, 0], sizes = [16, 16], strides = [1, 1]} : vector<22x16xf32> to vector<16x16xf32>
      %158 = vector.broadcast %39 : f32 to vector<16x16xf32>
      %159 = arith.mulf %158, %157 : vector<16x16xf32>
      %160 = arith.addf %156, %159 : vector<16x16xf32>
      %161 = vector.extract_strided_slice %68 {offsets = [3, 0], sizes = [16, 16], strides = [1, 1]} : vector<22x16xf32> to vector<16x16xf32>
      %162 = vector.broadcast %40 : f32 to vector<16x16xf32>
      %163 = arith.mulf %162, %161 : vector<16x16xf32>
      %164 = arith.addf %160, %163 : vector<16x16xf32>
      %165 = vector.extract_strided_slice %69 {offsets = [3, 0], sizes = [16, 16], strides = [1, 1]} : vector<22x16xf32> to vector<16x16xf32>
      %166 = vector.broadcast %41 : f32 to vector<16x16xf32>
      %167 = arith.mulf %166, %165 : vector<16x16xf32>
      %168 = arith.addf %164, %167 : vector<16x16xf32>
      %169 = vector.extract_strided_slice %70 {offsets = [3, 0], sizes = [16, 16], strides = [1, 1]} : vector<22x16xf32> to vector<16x16xf32>
      %170 = vector.broadcast %42 : f32 to vector<16x16xf32>
      %171 = arith.mulf %170, %169 : vector<16x16xf32>
      %172 = arith.addf %168, %171 : vector<16x16xf32>
      %173 = vector.extract_strided_slice %71 {offsets = [3, 0], sizes = [16, 16], strides = [1, 1]} : vector<22x16xf32> to vector<16x16xf32>
      %174 = vector.broadcast %43 : f32 to vector<16x16xf32>
      %175 = arith.mulf %174, %173 : vector<16x16xf32>
      %176 = arith.addf %172, %175 : vector<16x16xf32>
      %177 = vector.extract_strided_slice %72 {offsets = [3, 0], sizes = [16, 16], strides = [1, 1]} : vector<22x16xf32> to vector<16x16xf32>
      %178 = vector.broadcast %44 : f32 to vector<16x16xf32>
      %179 = arith.mulf %178, %177 : vector<16x16xf32>
      %180 = arith.addf %176, %179 : vector<16x16xf32>
      %181 = vector.extract_strided_slice %66 {offsets = [4, 0], sizes = [16, 16], strides = [1, 1]} : vector<22x16xf32> to vector<16x16xf32>
      %182 = vector.broadcast %45 : f32 to vector<16x16xf32>
      %183 = arith.mulf %182, %181 : vector<16x16xf32>
      %184 = vector.extract_strided_slice %67 {offsets = [4, 0], sizes = [16, 16], strides = [1, 1]} : vector<22x16xf32> to vector<16x16xf32>
      %185 = vector.broadcast %46 : f32 to vector<16x16xf32>
      %186 = arith.mulf %185, %184 : vector<16x16xf32>
      %187 = arith.addf %183, %186 : vector<16x16xf32>
      %188 = vector.extract_strided_slice %68 {offsets = [4, 0], sizes = [16, 16], strides = [1, 1]} : vector<22x16xf32> to vector<16x16xf32>
      %189 = vector.broadcast %47 : f32 to vector<16x16xf32>
      %190 = arith.mulf %189, %188 : vector<16x16xf32>
      %191 = arith.addf %187, %190 : vector<16x16xf32>
      %192 = vector.extract_strided_slice %69 {offsets = [4, 0], sizes = [16, 16], strides = [1, 1]} : vector<22x16xf32> to vector<16x16xf32>
      %193 = vector.broadcast %48 : f32 to vector<16x16xf32>
      %194 = arith.mulf %193, %192 : vector<16x16xf32>
      %195 = arith.addf %191, %194 : vector<16x16xf32>
      %196 = vector.extract_strided_slice %70 {offsets = [4, 0], sizes = [16, 16], strides = [1, 1]} : vector<22x16xf32> to vector<16x16xf32>
      %197 = vector.broadcast %49 : f32 to vector<16x16xf32>
      %198 = arith.mulf %197, %196 : vector<16x16xf32>
      %199 = arith.addf %195, %198 : vector<16x16xf32>
      %200 = vector.extract_strided_slice %71 {offsets = [4, 0], sizes = [16, 16], strides = [1, 1]} : vector<22x16xf32> to vector<16x16xf32>
      %201 = vector.broadcast %50 : f32 to vector<16x16xf32>
      %202 = arith.mulf %201, %200 : vector<16x16xf32>
      %203 = arith.addf %199, %202 : vector<16x16xf32>
      %204 = vector.extract_strided_slice %72 {offsets = [4, 0], sizes = [16, 16], strides = [1, 1]} : vector<22x16xf32> to vector<16x16xf32>
      %205 = vector.broadcast %51 : f32 to vector<16x16xf32>
      %206 = arith.mulf %205, %204 : vector<16x16xf32>
      %207 = arith.addf %203, %206 : vector<16x16xf32>
      %208 = vector.extract_strided_slice %66 {offsets = [5, 0], sizes = [16, 16], strides = [1, 1]} : vector<22x16xf32> to vector<16x16xf32>
      %209 = vector.broadcast %52 : f32 to vector<16x16xf32>
      %210 = arith.mulf %209, %208 : vector<16x16xf32>
      %211 = vector.extract_strided_slice %67 {offsets = [5, 0], sizes = [16, 16], strides = [1, 1]} : vector<22x16xf32> to vector<16x16xf32>
      %212 = vector.broadcast %53 : f32 to vector<16x16xf32>
      %213 = arith.mulf %212, %211 : vector<16x16xf32>
      %214 = arith.addf %210, %213 : vector<16x16xf32>
      %215 = vector.extract_strided_slice %68 {offsets = [5, 0], sizes = [16, 16], strides = [1, 1]} : vector<22x16xf32> to vector<16x16xf32>
      %216 = vector.broadcast %54 : f32 to vector<16x16xf32>
      %217 = arith.mulf %216, %215 : vector<16x16xf32>
      %218 = arith.addf %214, %217 : vector<16x16xf32>
      %219 = vector.extract_strided_slice %69 {offsets = [5, 0], sizes = [16, 16], strides = [1, 1]} : vector<22x16xf32> to vector<16x16xf32>
      %220 = vector.broadcast %55 : f32 to vector<16x16xf32>
      %221 = arith.mulf %220, %219 : vector<16x16xf32>
      %222 = arith.addf %218, %221 : vector<16x16xf32>
      %223 = vector.extract_strided_slice %70 {offsets = [5, 0], sizes = [16, 16], strides = [1, 1]} : vector<22x16xf32> to vector<16x16xf32>
      %224 = vector.broadcast %56 : f32 to vector<16x16xf32>
      %225 = arith.mulf %224, %223 : vector<16x16xf32>
      %226 = arith.addf %222, %225 : vector<16x16xf32>
      %227 = vector.extract_strided_slice %71 {offsets = [5, 0], sizes = [16, 16], strides = [1, 1]} : vector<22x16xf32> to vector<16x16xf32>
      %228 = vector.broadcast %57 : f32 to vector<16x16xf32>
      %229 = arith.mulf %228, %227 : vector<16x16xf32>
      %230 = arith.addf %226, %229 : vector<16x16xf32>
      %231 = vector.extract_strided_slice %72 {offsets = [5, 0], sizes = [16, 16], strides = [1, 1]} : vector<22x16xf32> to vector<16x16xf32>
      %232 = vector.broadcast %58 : f32 to vector<16x16xf32>
      %233 = arith.mulf %232, %231 : vector<16x16xf32>
      %234 = arith.addf %230, %233 : vector<16x16xf32>
      %235 = vector.extract_strided_slice %66 {offsets = [6, 0], sizes = [16, 16], strides = [1, 1]} : vector<22x16xf32> to vector<16x16xf32>
      %236 = vector.broadcast %59 : f32 to vector<16x16xf32>
      %237 = arith.mulf %236, %235 : vector<16x16xf32>
      %238 = vector.extract_strided_slice %67 {offsets = [6, 0], sizes = [16, 16], strides = [1, 1]} : vector<22x16xf32> to vector<16x16xf32>
      %239 = vector.broadcast %60 : f32 to vector<16x16xf32>
      %240 = arith.mulf %239, %238 : vector<16x16xf32>
      %241 = arith.addf %237, %240 : vector<16x16xf32>
      %242 = vector.extract_strided_slice %68 {offsets = [6, 0], sizes = [16, 16], strides = [1, 1]} : vector<22x16xf32> to vector<16x16xf32>
      %243 = vector.broadcast %61 : f32 to vector<16x16xf32>
      %244 = arith.mulf %243, %242 : vector<16x16xf32>
      %245 = arith.addf %241, %244 : vector<16x16xf32>
      %246 = vector.extract_strided_slice %69 {offsets = [6, 0], sizes = [16, 16], strides = [1, 1]} : vector<22x16xf32> to vector<16x16xf32>
      %247 = vector.broadcast %62 : f32 to vector<16x16xf32>
      %248 = arith.mulf %247, %246 : vector<16x16xf32>
      %249 = arith.addf %245, %248 : vector<16x16xf32>
      %250 = vector.extract_strided_slice %70 {offsets = [6, 0], sizes = [16, 16], strides = [1, 1]} : vector<22x16xf32> to vector<16x16xf32>
      %251 = vector.broadcast %63 : f32 to vector<16x16xf32>
      %252 = arith.mulf %251, %250 : vector<16x16xf32>
      %253 = arith.addf %249, %252 : vector<16x16xf32>
      %254 = vector.extract_strided_slice %71 {offsets = [6, 0], sizes = [16, 16], strides = [1, 1]} : vector<22x16xf32> to vector<16x16xf32>
      %255 = vector.broadcast %64 : f32 to vector<16x16xf32>
      %256 = arith.mulf %255, %254 : vector<16x16xf32>
      %257 = arith.addf %253, %256 : vector<16x16xf32>
      %258 = vector.extract_strided_slice %72 {offsets = [6, 0], sizes = [16, 16], strides = [1, 1]} : vector<22x16xf32> to vector<16x16xf32>
      %259 = vector.broadcast %65 : f32 to vector<16x16xf32>
      %260 = arith.mulf %259, %258 : vector<16x16xf32>
      %261 = arith.addf %257, %260 : vector<16x16xf32>
      %262 = arith.addf %99, %126 : vector<16x16xf32>
      %263 = arith.addf %153, %180 : vector<16x16xf32>
      %264 = arith.addf %262, %263 : vector<16x16xf32>
      %265 = arith.addf %207, %234 : vector<16x16xf32>
      %266 = arith.addf %265, %261 : vector<16x16xf32>
      %267 = arith.addf %264, %266 : vector<16x16xf32>
      %268 = arith.negf %267 : vector<16x16xf32>
      %269 = math.exp %268 : vector<16x16xf32>
      %cst_109 = arith.constant 1.000000e+00 : f32
      %270 = vector.broadcast %cst_109 : f32 to vector<16x16xf32>
      %271 = arith.addf %270, %269 : vector<16x16xf32>
      %272 = arith.divf %270, %271 : vector<16x16xf32>
      %c0_110 = arith.constant 0 : index
      %c0_111 = arith.constant 0 : index
      %c0_112 = arith.constant 0 : index
      %c0_113 = arith.constant 0 : index
      %273 = vector.load %arg4[%c0_110, %c0_111, %c0_112, %c0_113] : memref<1x1x16x16xf32, #tpu.memory_space<vmem>>, vector<1x1x16x16xf32>
      %274 = vector.shape_cast %273 : vector<1x1x16x16xf32> to vector<16x16xf32>
      %275 = vector.shape_cast %272 : vector<16x16xf32> to vector<1x1x16x16xf32>
      tpu.vector_store %arg4[%c0_110, %c0_111, %c0_112, %c0_113], %275 {strides = array<i32>} : memref<1x1x16x16xf32, #tpu.memory_space<vmem>>, vector<1x1x16x16xf32>,
    } else {
    }
    return
  }
  func.func @transform_0(%arg0: i32, %arg1: i32) -> (i32, i32, i32, i32) {
    %c0_i32 = arith.constant 0 : i32
    %c0_i32_0 = arith.constant 0 : i32
    %c0_i32_1 = arith.constant 0 : i32
    return %arg0, %arg1, %c0_i32, %c0_i32_0 : i32, i32, i32, i32
  }
  func.func @transform_1(%arg0: i32, %arg1: i32) -> (i32, i32) {
    %c0_i32 = arith.constant 0 : i32
    %c0_i32_0 = arith.constant 0 : i32
    %c0_i32_1 = arith.constant 0 : i32
    return %c0_i32, %c0_i32_0 : i32, i32
  }
  func.func @transform_2(%arg0: i32, %arg1: i32) -> (i32, i32, i32, i32) {
    %c0_i32 = arith.constant 0 : i32
    %c0_i32_0 = arith.constant 0 : i32
    %c0_i32_1 = arith.constant 0 : i32
    %c0_i32_2 = arith.constant 0 : i32
    return %arg0, %c0_i32, %c0_i32_0, %c0_i32_1 : i32, i32, i32, i32
  }
}

</mosaic_0001>

<llo_original>
// kernel: tpu_custom_call.1
$region0: #{tpu_custom_call.1}
  #allocation0 [shape = 'u32[]', space=smem, size = 0x4, offset = 0x4, fixed_abs, tag = 'smem constant byte address 0x4 - core index']
  #allocation1 [shape = 'u32[144,128]{1,0:T(1,128)}', space=vmem, size = 0x12000, scoped, tag = 'internal scratch']
  #allocation2 [shape = 'f32[16,16]{1,0:T(8,128)}', space=vmem, size = 0x2000, scoped, tag = 'scratch operand']
  #allocation3 [shape = 'f32[22,22]{1,0:T(8,128)}', space=vmem, size = 0x3000, scoped, tag = 'scratch operand']
  %s0 = inlined_call_operand.hbm [shape: f32[2,4,16,16], index: 0, kind: input, shape index: {}]
  %s1 = inlined_call_operand.hbm [shape: f32[7,7], index: 1, kind: input, shape index: {}]
  %s2 = inlined_call_operand.hbm [shape: f32[2,1,16,16], index: 2, kind: output, shape index: {}]
  %s3 = sld [smem:[#allocation0]]
  $region61: #{tpu_custom_call.1} parent=0
    _
  %s5 = ssub.s32 1, %s3
  %s6 = scalar_select 0, %s5, %s3
  $region1: #{tpu_custom_call.1} parent=0
    #allocation4 [shape = 'u8[65536]{0}', space=vmem, size = 0x10000, scoped, tag = 'input window, operand 0']
    #allocation5 [shape = 's32[2]{0}', space=sflag, size = 0x8, scoped, tag = 'scoped memory for tpu_custom_call.1']
    #allocation6 [shape = 's32[2]{0}', space=sflag, size = 0x8, scoped, tag = 'scoped memory for tpu_custom_call.1']
    #allocation7 [shape = 's32[2]{0}', space=sflag, size = 0x8, scoped, tag = 'scoped memory for tpu_custom_call.1']
    #allocation8 [shape = 'u8[4096]{0}', space=smem, size = 0x1000, scoped, tag = 'input window, operand 1, single buffered']
    #allocation9 [shape = 'u8[16384]{0}', space=vmem, size = 0x4000, scoped, tag = 'output window, operand 0']
    %7 = vsyncpa [#allocation5], 0
    %s8 = scalar_lea.sflag [#allocation5], 1
    %9 = vsyncpa %s8, 0
    %10 = vsyncpa [#allocation7], 0
    %11 = vsyncpa [#allocation6], 0
    %s12 = scalar_lea.sflag [#allocation6], 1
    %13 = vsyncpa %s12, 0
    loop: start=0, step=1, limit=4
    $region2: #{tpu_custom_call.1} parent=1 // loop_pre_header
      _
    $region3: #{tpu_custom_call.1} parent=1 // loop_header
      %s15 = sphi 0, %s19
      %p16 = scmp.ge.s32.totalorder %s15, 4
      %s22 = sphi 0, %s34
      %s23 = sphi 0, %s30
      %s24 = sphi 0, %s22
      %s25 = sphi 0, %s23
      %s26 = sphi 0, %s24
      %s27 = sphi 0, %s25
      %s39 = sphi 0, %s41
      %s42 = sphi 0, %s39
      %s43 = sphi 0, %s42
      %s59 = sphi 0, %s43
      %s63 = sphi 0, %s63
      %s65 = sphi 0, %s63
      %s66 = sphi 0, %s65
      %s80 = sphi 0, %s66
      %s86 = sphi 0, %s88
      %s89 = sphi 0, %s86
      %s90 = sphi 0, %s89
      %s106 = sphi 0, %s90
    $region4: #{tpu_custom_call.1} parent=1 // loop_header_branch
      %18 = sbr.rel (%p16) target = $region8
    $region5: #{tpu_custom_call.1} parent=1 // loop_body
      %s20 = ssub.s32 %s15, 1
      %s21 = ssub.s32 %s15, 2
      %s28 = sadd.s32 1, %s23
      %p29 = scmp.ge.s32.totalorder %s28, 1
      %s30 = scalar_select %p29, 0, %s28
      %s31 = sadd.s32 1, %s22
      %s32 = scalar_select %p29, %s31, %s22
      %p33 = scmp.ge.s32.totalorder %s32, 2
      %s34 = scalar_select %p33, 0, %s32
      %s35 = ssub.s32 %s22, %s34
      %s36 = ssub.s32 %s23, %s30
      %s37 = sor.u32 %s35, %s36
      %p38 = scmp.eq.s32.totalorder %s37, 0
      %s40 = sadd.s32 %s39, 1
      %s41 = scalar_select %p38, %s39, %s40
      %p44 = pneg %p38
      %p45 = scmp.eq.s32.totalorder %s15, 1
      %p46 = por %p44, %p45
      %p47 = scmp.ne.s32.totalorder %s39, %s42
      %p48 = scmp.eq.s32.totalorder %s15, 0
      %p49 = por %p47, %p48
      %p50 = scmp.ne.s32.totalorder %s39, %s42
      %p51 = scmp.eq.s32.totalorder %s20, 1
      %p52 = por %p50, %p51
      %p53 = scmp.ne.s32.totalorder %s42, %s43
      %p54 = scmp.eq.s32.totalorder %s20, 0
      %p55 = por %p53, %p54
      %p56 = scmp.ne.s32.totalorder %s42, %s43
      %p57 = scmp.eq.s32.totalorder %s21, 1
      %p58 = por %p56, %p57
      %p60 = scmp.ne.s32.totalorder %s43, %s59
      %p61 = scmp.eq.s32.totalorder %s21, 0
      %p62 = por %p60, %p61
      %s64 = sadd.s32 %s63, 1
      %p67 = scmp.eq.s32.totalorder %s15, 1
      %p68 = scmp.ne.s32.totalorder %s63, %s65
      %p69 = scmp.eq.s32.totalorder %s15, 0
      %p70 = por %p68, %p69
      %p71 = scmp.ne.s32.totalorder %s63, %s65
      %p72 = scmp.eq.s32.totalorder %s20, 1
      %p73 = por %p71, %p72
      %p74 = scmp.ne.s32.totalorder %s65, %s66
      %p75 = scmp.eq.s32.totalorder %s20, 0
      %p76 = por %p74, %p75
      %p77 = scmp.ne.s32.totalorder %s65, %s66
      %p78 = scmp.eq.s32.totalorder %s21, 1
      %p79 = por %p77, %p78
      %p81 = scmp.ne.s32.totalorder %s66, %s80
      %p82 = scmp.eq.s32.totalorder %s21, 0
      %p83 = por %p81, %p82
      %s84 = ssub.s32 %s22, %s34
      %p85 = scmp.eq.s32.totalorder %s84, 0
      %s87 = sadd.s32 %s86, 1
      %s88 = scalar_select %p85, %s86, %s87
      %p91 = pneg %p85
      %p92 = scmp.eq.s32.totalorder %s15, 1
      %p93 = por %p91, %p92
      %p94 = scmp.ne.s32.totalorder %s86, %s89
      %p95 = scmp.eq.s32.totalorder %s15, 0
      %p96 = por %p94, %p95
      %p97 = scmp.ne.s32.totalorder %s86, %s89
      %p98 = scmp.eq.s32.totalorder %s20, 1
      %p99 = por %p97, %p98
      %p100 = scmp.ne.s32.totalorder %s89, %s90
      %p101 = scmp.eq.s32.totalorder %s20, 0
      %p102 = por %p100, %p101
      %p103 = scmp.ne.s32.totalorder %s89, %s90
      %p104 = scmp.eq.s32.totalorder %s21, 1
      %p105 = por %p103, %p104
      %p107 = scmp.ne.s32.totalorder %s90, %s106
      %p108 = scmp.eq.s32.totalorder %s21, 0
      %p109 = por %p107, %p108
      %p110 = scmp.le.s32.totalorder 1, %s15
      %p111 = scmp.lt.s32.totalorder %s15, 3
      %p112 = pnand %p110, %p111
      %p113 = pneg %p112
      // Predicated region
      $region9: #{tpu_custom_call.1} parent=5 // pred_check
        _
      $region10: #{tpu_custom_call.1} parent=5 // pred_check_branch
        %115 = sbr.rel (%p112) target = $region12
      $region11: #{tpu_custom_call.1} parent=5 // pred_region
        %s116 = ssub.s32 %s15, 1
        // Predicated region
        $region13: #{tpu_custom_call.1} parent=11 // pred_check
          %p117 = pneg %p76
        $region14: #{tpu_custom_call.1} parent=11 // pred_check_branch
          %119 = sbr.rel (%p117) target = $region16
        $region15: #{tpu_custom_call.1} parent=11 // pred_region
          %s121 = ssub.s32 128, 128
          %122 = vsyncadd [#allocation7], %s121
          %125 = dma.hbm_to_smem %s1, 128, [#allocation8], [#allocation7]
        $region16: #{tpu_custom_call.1} parent=11 // pred_fallthru
          _
      $region12: #{tpu_custom_call.1} parent=5 // pred_fallthru
        _
      %p126 = scmp.lt.s32.totalorder %s15, 2
      // Predicated region
      $region17: #{tpu_custom_call.1} parent=5 // pred_check
        %p127 = pneg %p126
      $region18: #{tpu_custom_call.1} parent=5 // pred_check_branch
        %129 = sbr.rel (%p127) target = $region20
      $region19: #{tpu_custom_call.1} parent=5 // pred_region
        // Predicated region
        $region21: #{tpu_custom_call.1} parent=19 // pred_check
          %p130 = pneg %p49
        $region22: #{tpu_custom_call.1} parent=19 // pred_check_branch
          %132 = sbr.rel (%p130) target = $region24
        $region23: #{tpu_custom_call.1} parent=19 // pred_region
          %s133 = sand.u32 %s39, 1
          %s134 = scalar_lea.sflag [#allocation5], %s133
          %s135 = sand.u32 %s39, 1
          %s136 = smul.addr %s135, 64
          %s137 = scalar_lea.vmem [#allocation4], %s136
          %s138 = smul.u32 4, %s23
          %s140 = ssub.s32 1024, 1024
          %141 = vsyncadd %s134, %s140
          %s142 = smul.addr %s138, 2
          %s143 = smul.addr %s22, 8
          %s144 = sadd.s32 %s142, %s143
          %s145 = smul.addr %s144, 128
          %s146 = scalar_lea.hbm %s0, %s145
          %s147 = sshll.u32 %s137, 4
          %s148 = int_to_ptr.vmem [resolvable:$true] %s147
          %153 = dma.hbm_to_vmem [thread:$0]  %s146, 1024, %s148, %s134, 128, 128, 8
        $region24: #{tpu_custom_call.1} parent=19 // pred_fallthru
          _
      $region20: #{tpu_custom_call.1} parent=5 // pred_fallthru
        _
      %p154 = scmp.le.s32.totalorder 1, %s15
      %p155 = scmp.lt.s32.totalorder %s15, 3
      %p156 = pnand %p154, %p155
      %p157 = pneg %p156
      // Predicated region
      $region25: #{tpu_custom_call.1} parent=5 // pred_check
        _
      $region26: #{tpu_custom_call.1} parent=5 // pred_check_branch
        %159 = sbr.rel (%p156) target = $region28
      $region27: #{tpu_custom_call.1} parent=5 // pred_region
        %s160 = ssub.s32 %s15, 1
        %s161 = sand.u32 %s42, 1
        %s162 = scalar_lea.sflag [#allocation5], %s161
        %s163 = sand.u32 %s42, 1
        %s164 = smul.addr %s163, 64
        %s165 = scalar_lea.vmem [#allocation4], %s164
        // Predicated region
        $region29: #{tpu_custom_call.1} parent=27 // pred_check
          %p166 = pneg %p55
        $region30: #{tpu_custom_call.1} parent=27 // pred_check_branch
          %168 = sbr.rel (%p166) target = $region32
        $region31: #{tpu_custom_call.1} parent=27 // pred_region
          %169 = dma.done %s162, 1024
        $region32: #{tpu_custom_call.1} parent=27 // pred_fallthru
          _
        // Predicated region
        $region33: #{tpu_custom_call.1} parent=27 // pred_check
          %p170 = pneg %p76
        $region34: #{tpu_custom_call.1} parent=27 // pred_check_branch
          %172 = sbr.rel (%p170) target = $region36
        $region35: #{tpu_custom_call.1} parent=27 // pred_region
          %173 = dma.done [#allocation7], 128
        $region36: #{tpu_custom_call.1} parent=27 // pred_fallthru
          _
        %174 = sfence
        %s175 = sand.u32 %s42, 1
        %s176 = scalar_lea.sflag [#allocation5], %s175
        %s177 = sand.u32 %s42, 1
        %s178 = smul.addr %s177, 64
        %s179 = scalar_lea.vmem [#allocation4], %s178
        %p180 = pneg %p55
        %p181 = pneg %p52
        %p182 = pneg %p76
        %p183 = pneg %p73
        %p184 = pneg %p102
        %p185 = pneg %p99
        %s186 = sand.u32 %s89, 1
        %s187 = scalar_lea.sflag [#allocation6], %s186
        %s188 = sand.u32 %s89, 1
        %s189 = smul.addr %s188, 16
        %s190 = scalar_lea.vmem [#allocation9], %s189
        %s191 = smul.u32 4, %s25
        %v192 = vld [vmem:[%s165] sm:$0xff]
        %v193 = vld [vmem:[%s165 + $0x8] sm:$0xff]
        %v194 = vld [vmem:[%s165 + $0x10] sm:$0xff]
        %v195 = vld [vmem:[%s165 + $0x18] sm:$0xff]
        %v196 = vld [vmem:[%s165 + $0x20] sm:$0xff]
        %v197 = vld [vmem:[%s165 + $0x28] sm:$0xff]
        %v198 = vld [vmem:[%s165 + $0x30] sm:$0xff]
        %v199 = vld [vmem:[%s165 + $0x38] sm:$0xff]
        %vm200 = vcmask 130048
        %v201 = vsel %vm200, %v192, -inf
        %v202 = vsel %vm200, %v194, -inf
        %v203 = vsel %vm200, %v196, -inf
        %v204 = vmax.f32 %v201, %v203
        %v205 = vsel %vm200, %v198, -inf
        %v206 = vmax.f32 %v202, %v205
        %v207 = vmax.f32 %v204, %v206
        %v208 = vsel %vm200, %v193, -inf
        %v209 = vsel %vm200, %v195, -inf
        %v210 = vsel %vm200, %v197, -inf
        %v211 = vmax.f32 %v208, %v210
        %v212 = vsel %vm200, %v199, -inf
        %v213 = vmax.f32 %v209, %v212
        %v214 = vmax.f32 %v211, %v213
        %p215 = scmp.eq.s32.totalorder %s25, 0
        // Predicated region
        $region37: #{tpu_custom_call.1} parent=27 // pred_check
          %p216 = pneg %p215
        $region38: #{tpu_custom_call.1} parent=27 // pred_check_branch
          %218 = sbr.rel (%p216) target = $region40
        $region39: #{tpu_custom_call.1} parent=27 // pred_region
          %219 = vst.msk [vmem:[#allocation2] sm:$0xff] %vm200, %v207
          %220 = vst.msk [vmem:[#allocation2 + $0x8] sm:$0xff] %vm200, %v214
        $region40: #{tpu_custom_call.1} parent=27 // pred_fallthru
          _
        %p221 = scmp.ne.s32.totalorder %s25, 0
        // Predicated region
        $region41: #{tpu_custom_call.1} parent=27 // pred_check
          %p222 = pneg %p221
        $region42: #{tpu_custom_call.1} parent=27 // pred_check_branch
          %224 = sbr.rel (%p222) target = $region44
        $region43: #{tpu_custom_call.1} parent=27 // pred_region
          %v225 = vld [vmem:[#allocation2] sm:$0xff]
          %v226 = vld [vmem:[#allocation2 + $0x8] sm:$0xff]
          %v227 = vmax.f32 %v225, %v207
          %v228 = vmax.f32 %v226, %v214
          %229 = vst.msk [vmem:[#allocation2] sm:$0xff] %vm200, %v227
          %230 = vst.msk [vmem:[#allocation2 + $0x8] sm:$0xff] %vm200, %v228
        $region44: #{tpu_custom_call.1} parent=27 // pred_fallthru
          _
        // Predicated region
        $region45: #{tpu_custom_call.1} parent=27 // pred_check
          %p231 = pneg %p215
        $region46: #{tpu_custom_call.1} parent=27 // pred_check_branch
          %233 = sbr.rel (%p231) target = $region48
        $region47: #{tpu_custom_call.1} parent=27 // pred_region
          %vm234 = vcmask 179200
          %235 = vst.msk [vmem:[#allocation3] sm:$0xff] %vm234, 0.0
          %236 = vst.msk [vmem:[#allocation3 + $0x8] sm:$0xff] %vm234, 0.0
          %vm237 = vcmask 177152
          %238 = vst.msk [vmem:[#allocation3 + $0x10] sm:$0x3f] %vm237, 0.0
          %v239 = vld [vmem:[#allocation2] sm:$0xff]
          %v240 = vld [vmem:[#allocation2 + $0x8] sm:$0xff]
          %243 = vrot.lane.b32.xlu0 %v239, 3
          %v244 = vpop.permute.xlu0 %243
          %245 = vrot.lane.b32.xlu0 %v240, 3
          %v246 = vpop.permute.xlu0 %245
          %vm249 = vcmask 154648
          %250 = vst.msk [vmem:[#allocation3 + $0x3] sm:$0xff] %vm249, %v244
          %251 = vst.msk [vmem:[#allocation3 + $0xb] sm:$0xff] %vm249, %v246
          %v252 = vld [vmem:[#allocation3] sm:$0xff]
          %v253 = vld [vmem:[#allocation3 + $0x8] sm:$0xff]
          %v254 = vld [vmem:[#allocation3 + $0x10] sm:$0x3f]
          %s255 = sld [smem:[#allocation8]]
          %s256 = sld [smem:[#allocation8 + $0x1]]
          %s257 = sld [smem:[#allocation8 + $0x2]]
          %s258 = sld [smem:[#allocation8 + $0x3]]
          %s259 = sld [smem:[#allocation8 + $0x4]]
          %s260 = sld [smem:[#allocation8 + $0x5]]
          %s261 = sld [smem:[#allocation8 + $0x6]]
          %s262 = sld [smem:[#allocation8 + $0x80]]
          %s263 = sld [smem:[#allocation8 + $0x81]]
          %s264 = sld [smem:[#allocation8 + $0x82]]
          %s265 = sld [smem:[#allocation8 + $0x83]]
          %s266 = sld [smem:[#allocation8 + $0x84]]
          %s267 = sld [smem:[#allocation8 + $0x85]]
          %s268 = sld [smem:[#allocation8 + $0x86]]
          %s269 = sld [smem:[#allocation8 + $0x100]]
          %s270 = sld [smem:[#allocation8 + $0x101]]
          %s271 = sld [smem:[#allocation8 + $0x102]]
          %s272 = sld [smem:[#allocation8 + $0x103]]
          %s273 = sld [smem:[#allocation8 + $0x104]]
          %s274 = sld [smem:[#allocation8 + $0x105]]
          %s275 = sld [smem:[#allocation8 + $0x106]]
          %s276 = sld [smem:[#allocation8 + $0x180]]
          %s277 = sld [smem:[#allocation8 + $0x181]]
          %s278 = sld [smem:[#allocation8 + $0x182]]
          %s279 = sld [smem:[#allocation8 + $0x183]]
          %s280 = sld [smem:[#allocation8 + $0x184]]
          %s281 = sld [smem:[#allocation8 + $0x185]]
          %s282 = sld [smem:[#allocation8 + $0x186]]
          %s283 = sld [smem:[#allocation8 + $0x200]]
          %s284 = sld [smem:[#allocation8 + $0x201]]
          %s285 = sld [smem:[#allocation8 + $0x202]]
          %s286 = sld [smem:[#allocation8 + $0x203]]
          %s287 = sld [smem:[#allocation8 + $0x204]]
          %s288 = sld [smem:[#allocation8 + $0x205]]
          %s289 = sld [smem:[#allocation8 + $0x206]]
          %s290 = sld [smem:[#allocation8 + $0x280]]
          %s291 = sld [smem:[#allocation8 + $0x281]]
          %s292 = sld [smem:[#allocation8 + $0x282]]
          %s293 = sld [smem:[#allocation8 + $0x283]]
          %s294 = sld [smem:[#allocation8 + $0x284]]
          %s295 = sld [smem:[#allocation8 + $0x285]]
          %s296 = sld [smem:[#allocation8 + $0x286]]
          %s297 = sld [smem:[#allocation8 + $0x300]]
          %s298 = sld [smem:[#allocation8 + $0x301]]
          %s299 = sld [smem:[#allocation8 + $0x302]]
          %s300 = sld [smem:[#allocation8 + $0x303]]
          %s301 = sld [smem:[#allocation8 + $0x304]]
          %s302 = sld [smem:[#allocation8 + $0x305]]
          %s303 = sld [smem:[#allocation8 + $0x306]]
          %v304 = vstv %s255
          %v305 = vmul.f32 %v304, %v252
          %v306 = vmul.f32 %v304, %v253
          %v307 = vstv %s256
          %v308 = vmul.f32 %v307, %v252
          %v309 = vmul.f32 %v307, %v253
          %312 = vrot.lane.b32.xlu0 %v308, 127
          %v313 = vpop.permute.xlu0 %312
          %314 = vrot.lane.b32.xlu0 %v309, 127
          %v315 = vpop.permute.xlu0 %314
          %v318 = vadd.f32 %v305, %v313
          %v319 = vadd.f32 %v306, %v315
          %v320 = vstv %s257
          %v321 = vmul.f32 %v320, %v252
          %v322 = vmul.f32 %v320, %v253
          %325 = vrot.lane.b32.xlu0 %v321, 126
          %v326 = vpop.permute.xlu0 %325
          %327 = vrot.lane.b32.xlu0 %v322, 126
          %v328 = vpop.permute.xlu0 %327
          %v331 = vadd.f32 %v318, %v326
          %v332 = vadd.f32 %v319, %v328
          %v333 = vstv %s258
          %v334 = vmul.f32 %v333, %v252
          %v335 = vmul.f32 %v333, %v253
          %338 = vrot.lane.b32.xlu0 %v334, 125
          %v339 = vpop.permute.xlu0 %338
          %340 = vrot.lane.b32.xlu0 %v335, 125
          %v341 = vpop.permute.xlu0 %340
          %v344 = vadd.f32 %v331, %v339
          %v345 = vadd.f32 %v332, %v341
          %v346 = vstv %s259
          %v347 = vmul.f32 %v346, %v252
          %v348 = vmul.f32 %v346, %v253
          %351 = vrot.lane.b32.xlu0 %v347, 124
          %v352 = vpop.permute.xlu0 %351
          %353 = vrot.lane.b32.xlu0 %v348, 124
          %v354 = vpop.permute.xlu0 %353
          %v357 = vadd.f32 %v344, %v352
          %v358 = vadd.f32 %v345, %v354
          %v359 = vstv %s260
          %v360 = vmul.f32 %v359, %v252
          %v361 = vmul.f32 %v359, %v253
          %364 = vrot.lane.b32.xlu0 %v360, 123
          %v365 = vpop.permute.xlu0 %364
          %366 = vrot.lane.b32.xlu0 %v361, 123
          %v367 = vpop.permute.xlu0 %366
          %v370 = vadd.f32 %v357, %v365
          %v371 = vadd.f32 %v358, %v367
          %v372 = vstv %s261
          %v373 = vmul.f32 %v372, %v252
          %v374 = vmul.f32 %v372, %v253
          %377 = vrot.lane.b32.xlu0 %v373, 122
          %v378 = vpop.permute.xlu0 %377
          %379 = vrot.lane.b32.xlu0 %v374, 122
          %v380 = vpop.permute.xlu0 %379
          %v383 = vadd.f32 %v370, %v378
          %v384 = vadd.f32 %v371, %v380
          %v385 = vstv %s262
          %v386 = vmul.f32 %v385, %v252
          %v387 = vmul.f32 %v385, %v253
          %v388 = vmul.f32 %v385, %v254
          %v389 = vstv %s263
          %v390 = vmul.f32 %v389, %v252
          %v391 = vmul.f32 %v389, %v253
          %v392 = vmul.f32 %v389, %v254
          %396 = vrot.lane.b32.xlu0 %v390, 127
          %v397 = vpop.permute.xlu0 %396
          %398 = vrot.lane.b32.xlu0 %v391, 127
          %v399 = vpop.permute.xlu0 %398
          %400 = vrot.lane.b32.xlu0 %v392, 127
          %v401 = vpop.permute.xlu0 %400
          %v405 = vadd.f32 %v386, %v397
          %v406 = vadd.f32 %v387, %v399
          %v407 = vadd.f32 %v388, %v401
          %v408 = vstv %s264
          %v409 = vmul.f32 %v408, %v252
          %v410 = vmul.f32 %v408, %v253
          %v411 = vmul.f32 %v408, %v254
          %415 = vrot.lane.b32.xlu0 %v409, 126
          %v416 = vpop.permute.xlu0 %415
          %417 = vrot.lane.b32.xlu0 %v410, 126
          %v418 = vpop.permute.xlu0 %417
          %419 = vrot.lane.b32.xlu0 %v411, 126
          %v420 = vpop.permute.xlu0 %419
          %v424 = vadd.f32 %v405, %v416
          %v425 = vadd.f32 %v406, %v418
          %v426 = vadd.f32 %v407, %v420
          %v427 = vstv %s265
          %v428 = vmul.f32 %v427, %v252
          %v429 = vmul.f32 %v427, %v253
          %v430 = vmul.f32 %v427, %v254
          %434 = vrot.lane.b32.xlu0 %v428, 125
          %v435 = vpop.permute.xlu0 %434
          %436 = vrot.lane.b32.xlu0 %v429, 125
          %v437 = vpop.permute.xlu0 %436
          %438 = vrot.lane.b32.xlu0 %v430, 125
          %v439 = vpop.permute.xlu0 %438
          %v443 = vadd.f32 %v424, %v435
          %v444 = vadd.f32 %v425, %v437
          %v445 = vadd.f32 %v426, %v439
          %v446 = vstv %s266
          %v447 = vmul.f32 %v446, %v252
          %v448 = vmul.f32 %v446, %v253
          %v449 = vmul.f32 %v446, %v254
          %453 = vrot.lane.b32.xlu0 %v447, 124
          %v454 = vpop.permute.xlu0 %453
          %455 = vrot.lane.b32.xlu0 %v448, 124
          %v456 = vpop.permute.xlu0 %455
          %457 = vrot.lane.b32.xlu0 %v449, 124
          %v458 = vpop.permute.xlu0 %457
          %v462 = vadd.f32 %v443, %v454
          %v463 = vadd.f32 %v444, %v456
          %v464 = vadd.f32 %v445, %v458
          %v465 = vstv %s267
          %v466 = vmul.f32 %v465, %v252
          %v467 = vmul.f32 %v465, %v253
          %v468 = vmul.f32 %v465, %v254
          %472 = vrot.lane.b32.xlu0 %v466, 123
          %v473 = vpop.permute.xlu0 %472
          %474 = vrot.lane.b32.xlu0 %v467, 123
          %v475 = vpop.permute.xlu0 %474
          %476 = vrot.lane.b32.xlu0 %v468, 123
          %v477 = vpop.permute.xlu0 %476
          %v481 = vadd.f32 %v462, %v473
          %v482 = vadd.f32 %v463, %v475
          %v483 = vadd.f32 %v464, %v477
          %v484 = vstv %s268
          %v485 = vmul.f32 %v484, %v252
          %v486 = vmul.f32 %v484, %v253
          %v487 = vmul.f32 %v484, %v254
          %491 = vrot.lane.b32.xlu0 %v485, 122
          %v492 = vpop.permute.xlu0 %491
          %493 = vrot.lane.b32.xlu0 %v486, 122
          %v494 = vpop.permute.xlu0 %493
          %495 = vrot.lane.b32.xlu0 %v487, 122
          %v496 = vpop.permute.xlu0 %495
          %v500 = vadd.f32 %v481, %v492
          %v501 = vadd.f32 %v482, %v494
          %v502 = vadd.f32 %v483, %v496
          %v503 = vstv %s269
          %v504 = vmul.f32 %v503, %v252
          %v505 = vmul.f32 %v503, %v253
          %v506 = vmul.f32 %v503, %v254
          %v507 = vstv %s270
          %v508 = vmul.f32 %v507, %v252
          %v509 = vmul.f32 %v507, %v253
          %v510 = vmul.f32 %v507, %v254
          %514 = vrot.lane.b32.xlu0 %v508, 127
          %v515 = vpop.permute.xlu0 %514
          %516 = vrot.lane.b32.xlu0 %v509, 127
          %v517 = vpop.permute.xlu0 %516
          %518 = vrot.lane.b32.xlu0 %v510, 127
          %v519 = vpop.permute.xlu0 %518
          %v523 = vadd.f32 %v504, %v515
          %v524 = vadd.f32 %v505, %v517
          %v525 = vadd.f32 %v506, %v519
          %v526 = vstv %s271
          %v527 = vmul.f32 %v526, %v252
          %v528 = vmul.f32 %v526, %v253
          %v529 = vmul.f32 %v526, %v254
          %533 = vrot.lane.b32.xlu0 %v527, 126
          %v534 = vpop.permute.xlu0 %533
          %535 = vrot.lane.b32.xlu0 %v528, 126
          %v536 = vpop.permute.xlu0 %535
          %537 = vrot.lane.b32.xlu0 %v529, 126
          %v538 = vpop.permute.xlu0 %537
          %v542 = vadd.f32 %v523, %v534
          %v543 = vadd.f32 %v524, %v536
          %v544 = vadd.f32 %v525, %v538
          %v545 = vstv %s272
          %v546 = vmul.f32 %v545, %v252
          %v547 = vmul.f32 %v545, %v253
          %v548 = vmul.f32 %v545, %v254
          %552 = vrot.lane.b32.xlu0 %v546, 125
          %v553 = vpop.permute.xlu0 %552
          %554 = vrot.lane.b32.xlu0 %v547, 125
          %v555 = vpop.permute.xlu0 %554
          %556 = vrot.lane.b32.xlu0 %v548, 125
          %v557 = vpop.permute.xlu0 %556
          %v561 = vadd.f32 %v542, %v553
          %v562 = vadd.f32 %v543, %v555
          %v563 = vadd.f32 %v544, %v557
          %v564 = vstv %s273
          %v565 = vmul.f32 %v564, %v252
          %v566 = vmul.f32 %v564, %v253
          %v567 = vmul.f32 %v564, %v254
          %571 = vrot.lane.b32.xlu0 %v565, 124
          %v572 = vpop.permute.xlu0 %571
          %573 = vrot.lane.b32.xlu0 %v566, 124
          %v574 = vpop.permute.xlu0 %573
          %575 = vrot.lane.b32.xlu0 %v567, 124
          %v576 = vpop.permute.xlu0 %575
          %v580 = vadd.f32 %v561, %v572
          %v581 = vadd.f32 %v562, %v574
          %v582 = vadd.f32 %v563, %v576
          %v583 = vstv %s274
          %v584 = vmul.f32 %v583, %v252
          %v585 = vmul.f32 %v583, %v253
          %v586 = vmul.f32 %v583, %v254
          %590 = vrot.lane.b32.xlu0 %v584, 123
          %v591 = vpop.permute.xlu0 %590
          %592 = vrot.lane.b32.xlu0 %v585, 123
          %v593 = vpop.permute.xlu0 %592
          %594 = vrot.lane.b32.xlu0 %v586, 123
          %v595 = vpop.permute.xlu0 %594
          %v599 = vadd.f32 %v580, %v591
          %v600 = vadd.f32 %v581, %v593
          %v601 = vadd.f32 %v582, %v595
          %v602 = vstv %s275
          %v603 = vmul.f32 %v602, %v252
          %v604 = vmul.f32 %v602, %v253
          %v605 = vmul.f32 %v602, %v254
          %609 = vrot.lane.b32.xlu0 %v603, 122
          %v610 = vpop.permute.xlu0 %609
          %611 = vrot.lane.b32.xlu0 %v604, 122
          %v612 = vpop.permute.xlu0 %611
          %613 = vrot.lane.b32.xlu0 %v605, 122
          %v614 = vpop.permute.xlu0 %613
          %v618 = vadd.f32 %v599, %v610
          %v619 = vadd.f32 %v600, %v612
          %v620 = vadd.f32 %v601, %v614
          %v621 = vstv %s276
          %v622 = vmul.f32 %v621, %v252
          %v623 = vmul.f32 %v621, %v253
          %v624 = vmul.f32 %v621, %v254
          %v625 = vstv %s277
          %v626 = vmul.f32 %v625, %v252
          %v627 = vmul.f32 %v625, %v253
          %v628 = vmul.f32 %v625, %v254
          %632 = vrot.lane.b32.xlu0 %v626, 127
          %v633 = vpop.permute.xlu0 %632
          %634 = vrot.lane.b32.xlu0 %v627, 127
          %v635 = vpop.permute.xlu0 %634
          %636 = vrot.lane.b32.xlu0 %v628, 127
          %v637 = vpop.permute.xlu0 %636
          %v641 = vadd.f32 %v622, %v633
          %v642 = vadd.f32 %v623, %v635
          %v643 = vadd.f32 %v624, %v637
          %v644 = vstv %s278
          %v645 = vmul.f32 %v644, %v252
          %v646 = vmul.f32 %v644, %v253
          %v647 = vmul.f32 %v644, %v254
          %651 = vrot.lane.b32.xlu0 %v645, 126
          %v652 = vpop.permute.xlu0 %651
          %653 = vrot.lane.b32.xlu0 %v646, 126
          %v654 = vpop.permute.xlu0 %653
          %655 = vrot.lane.b32.xlu0 %v647, 126
          %v656 = vpop.permute.xlu0 %655
          %v660 = vadd.f32 %v641, %v652
          %v661 = vadd.f32 %v642, %v654
          %v662 = vadd.f32 %v643, %v656
          %v663 = vstv %s279
          %v664 = vmul.f32 %v663, %v252
          %v665 = vmul.f32 %v663, %v253
          %v666 = vmul.f32 %v663, %v254
          %670 = vrot.lane.b32.xlu0 %v664, 125
          %v671 = vpop.permute.xlu0 %670
          %672 = vrot.lane.b32.xlu0 %v665, 125
          %v673 = vpop.permute.xlu0 %672
          %674 = vrot.lane.b32.xlu0 %v666, 125
          %v675 = vpop.permute.xlu0 %674
          %v679 = vadd.f32 %v660, %v671
          %v680 = vadd.f32 %v661, %v673
          %v681 = vadd.f32 %v662, %v675
          %v682 = vstv %s280
          %v683 = vmul.f32 %v682, %v252
          %v684 = vmul.f32 %v682, %v253
          %v685 = vmul.f32 %v682, %v254
          %689 = vrot.lane.b32.xlu0 %v683, 124
          %v690 = vpop.permute.xlu0 %689
          %691 = vrot.lane.b32.xlu0 %v684, 124
          %v692 = vpop.permute.xlu0 %691
          %693 = vrot.lane.b32.xlu0 %v685, 124
          %v694 = vpop.permute.xlu0 %693
          %v698 = vadd.f32 %v679, %v690
          %v699 = vadd.f32 %v680, %v692
          %v700 = vadd.f32 %v681, %v694
          %v701 = vstv %s281
          %v702 = vmul.f32 %v701, %v252
          %v703 = vmul.f32 %v701, %v253
          %v704 = vmul.f32 %v701, %v254
          %708 = vrot.lane.b32.xlu0 %v702, 123
          %v709 = vpop.permute.xlu0 %708
          %710 = vrot.lane.b32.xlu0 %v703, 123
          %v711 = vpop.permute.xlu0 %710
          %712 = vrot.lane.b32.xlu0 %v704, 123
          %v713 = vpop.permute.xlu0 %712
          %v717 = vadd.f32 %v698, %v709
          %v718 = vadd.f32 %v699, %v711
          %v719 = vadd.f32 %v700, %v713
          %v720 = vstv %s282
          %v721 = vmul.f32 %v720, %v252
          %v722 = vmul.f32 %v720, %v253
          %v723 = vmul.f32 %v720, %v254
          %727 = vrot.lane.b32.xlu0 %v721, 122
          %v728 = vpop.permute.xlu0 %727
          %729 = vrot.lane.b32.xlu0 %v722, 122
          %v730 = vpop.permute.xlu0 %729
          %731 = vrot.lane.b32.xlu0 %v723, 122
          %v732 = vpop.permute.xlu0 %731
          %v736 = vadd.f32 %v717, %v728
          %v737 = vadd.f32 %v718, %v730
          %v738 = vadd.f32 %v719, %v732
          %v739 = vstv %s283
          %v740 = vmul.f32 %v739, %v252
          %v741 = vmul.f32 %v739, %v253
          %v742 = vmul.f32 %v739, %v254
          %v743 = vstv %s284
          %v744 = vmul.f32 %v743, %v252
          %v745 = vmul.f32 %v743, %v253
          %v746 = vmul.f32 %v743, %v254
          %750 = vrot.lane.b32.xlu0 %v744, 127
          %v751 = vpop.permute.xlu0 %750
          %752 = vrot.lane.b32.xlu0 %v745, 127
          %v753 = vpop.permute.xlu0 %752
          %754 = vrot.lane.b32.xlu0 %v746, 127
          %v755 = vpop.permute.xlu0 %754
          %v759 = vadd.f32 %v740, %v751
          %v760 = vadd.f32 %v741, %v753
          %v761 = vadd.f32 %v742, %v755
          %v762 = vstv %s285
          %v763 = vmul.f32 %v762, %v252
          %v764 = vmul.f32 %v762, %v253
          %v765 = vmul.f32 %v762, %v254
          %769 = vrot.lane.b32.xlu0 %v763, 126
          %v770 = vpop.permute.xlu0 %769
          %771 = vrot.lane.b32.xlu0 %v764, 126
          %v772 = vpop.permute.xlu0 %771
          %773 = vrot.lane.b32.xlu0 %v765, 126
          %v774 = vpop.permute.xlu0 %773
          %v778 = vadd.f32 %v759, %v770
          %v779 = vadd.f32 %v760, %v772
          %v780 = vadd.f32 %v761, %v774
          %v781 = vstv %s286
          %v782 = vmul.f32 %v781, %v252
          %v783 = vmul.f32 %v781, %v253
          %v784 = vmul.f32 %v781, %v254
          %788 = vrot.lane.b32.xlu0 %v782, 125
          %v789 = vpop.permute.xlu0 %788
          %790 = vrot.lane.b32.xlu0 %v783, 125
          %v791 = vpop.permute.xlu0 %790
          %792 = vrot.lane.b32.xlu0 %v784, 125
          %v793 = vpop.permute.xlu0 %792
          %v797 = vadd.f32 %v778, %v789
          %v798 = vadd.f32 %v779, %v791
          %v799 = vadd.f32 %v780, %v793
          %v800 = vstv %s287
          %v801 = vmul.f32 %v800, %v252
          %v802 = vmul.f32 %v800, %v253
          %v803 = vmul.f32 %v800, %v254
          %807 = vrot.lane.b32.xlu0 %v801, 124
          %v808 = vpop.permute.xlu0 %807
          %809 = vrot.lane.b32.xlu0 %v802, 124
          %v810 = vpop.permute.xlu0 %809
          %811 = vrot.lane.b32.xlu0 %v803, 124
          %v812 = vpop.permute.xlu0 %811
          %v816 = vadd.f32 %v797, %v808
          %v817 = vadd.f32 %v798, %v810
          %v818 = vadd.f32 %v799, %v812
          %v819 = vstv %s288
          %v820 = vmul.f32 %v819, %v252
          %v821 = vmul.f32 %v819, %v253
          %v822 = vmul.f32 %v819, %v254
          %826 = vrot.lane.b32.xlu0 %v820, 123
          %v827 = vpop.permute.xlu0 %826
          %828 = vrot.lane.b32.xlu0 %v821, 123
          %v829 = vpop.permute.xlu0 %828
          %830 = vrot.lane.b32.xlu0 %v822, 123
          %v831 = vpop.permute.xlu0 %830
          %v835 = vadd.f32 %v816, %v827
          %v836 = vadd.f32 %v817, %v829
          %v837 = vadd.f32 %v818, %v831
          %v838 = vstv %s289
          %v839 = vmul.f32 %v838, %v252
          %v840 = vmul.f32 %v838, %v253
          %v841 = vmul.f32 %v838, %v254
          %845 = vrot.lane.b32.xlu0 %v839, 122
          %v846 = vpop.permute.xlu0 %845
          %847 = vrot.lane.b32.xlu0 %v840, 122
          %v848 = vpop.permute.xlu0 %847
          %849 = vrot.lane.b32.xlu0 %v841, 122
          %v850 = vpop.permute.xlu0 %849
          %v854 = vadd.f32 %v835, %v846
          %v855 = vadd.f32 %v836, %v848
          %v856 = vadd.f32 %v837, %v850
          %v857 = vstv %s290
          %v858 = vmul.f32 %v857, %v252
          %v859 = vmul.f32 %v857, %v253
          %v860 = vmul.f32 %v857, %v254
          %v861 = vstv %s291
          %v862 = vmul.f32 %v861, %v252
          %v863 = vmul.f32 %v861, %v253
          %v864 = vmul.f32 %v861, %v254
          %868 = vrot.lane.b32.xlu0 %v862, 127
          %v869 = vpop.permute.xlu0 %868
          %870 = vrot.lane.b32.xlu0 %v863, 127
          %v871 = vpop.permute.xlu0 %870
          %872 = vrot.lane.b32.xlu0 %v864, 127
          %v873 = vpop.permute.xlu0 %872
          %v877 = vadd.f32 %v858, %v869
          %v878 = vadd.f32 %v859, %v871
          %v879 = vadd.f32 %v860, %v873
          %v880 = vstv %s292
          %v881 = vmul.f32 %v880, %v252
          %v882 = vmul.f32 %v880, %v253
          %v883 = vmul.f32 %v880, %v254
          %887 = vrot.lane.b32.xlu0 %v881, 126
          %v888 = vpop.permute.xlu0 %887
          %889 = vrot.lane.b32.xlu0 %v882, 126
          %v890 = vpop.permute.xlu0 %889
          %891 = vrot.lane.b32.xlu0 %v883, 126
          %v892 = vpop.permute.xlu0 %891
          %v896 = vadd.f32 %v877, %v888
          %v897 = vadd.f32 %v878, %v890
          %v898 = vadd.f32 %v879, %v892
          %v899 = vstv %s293
          %v900 = vmul.f32 %v899, %v252
          %v901 = vmul.f32 %v899, %v253
          %v902 = vmul.f32 %v899, %v254
          %906 = vrot.lane.b32.xlu0 %v900, 125
          %v907 = vpop.permute.xlu0 %906
          %908 = vrot.lane.b32.xlu0 %v901, 125
          %v909 = vpop.permute.xlu0 %908
          %910 = vrot.lane.b32.xlu0 %v902, 125
          %v911 = vpop.permute.xlu0 %910
          %v915 = vadd.f32 %v896, %v907
          %v916 = vadd.f32 %v897, %v909
          %v917 = vadd.f32 %v898, %v911
          %v918 = vstv %s294
          %v919 = vmul.f32 %v918, %v252
          %v920 = vmul.f32 %v918, %v253
          %v921 = vmul.f32 %v918, %v254
          %925 = vrot.lane.b32.xlu0 %v919, 124
          %v926 = vpop.permute.xlu0 %925
          %927 = vrot.lane.b32.xlu0 %v920, 124
          %v928 = vpop.permute.xlu0 %927
          %929 = vrot.lane.b32.xlu0 %v921, 124
          %v930 = vpop.permute.xlu0 %929
          %v934 = vadd.f32 %v915, %v926
          %v935 = vadd.f32 %v916, %v928
          %v936 = vadd.f32 %v917, %v930
          %v937 = vstv %s295
          %v938 = vmul.f32 %v937, %v252
          %v939 = vmul.f32 %v937, %v253
          %v940 = vmul.f32 %v937, %v254
          %944 = vrot.lane.b32.xlu0 %v938, 123
          %v945 = vpop.permute.xlu0 %944
          %946 = vrot.lane.b32.xlu0 %v939, 123
          %v947 = vpop.permute.xlu0 %946
          %948 = vrot.lane.b32.xlu0 %v940, 123
          %v949 = vpop.permute.xlu0 %948
          %v953 = vadd.f32 %v934, %v945
          %v954 = vadd.f32 %v935, %v947
          %v955 = vadd.f32 %v936, %v949
          %v956 = vstv %s296
          %v957 = vmul.f32 %v956, %v252
          %v958 = vmul.f32 %v956, %v253
          %v959 = vmul.f32 %v956, %v254
          %963 = vrot.lane.b32.xlu0 %v957, 122
          %v964 = vpop.permute.xlu0 %963
          %965 = vrot.lane.b32.xlu0 %v958, 122
          %v966 = vpop.permute.xlu0 %965
          %967 = vrot.lane.b32.xlu0 %v959, 122
          %v968 = vpop.permute.xlu0 %967
          %v972 = vadd.f32 %v953, %v964
          %v973 = vadd.f32 %v954, %v966
          %v974 = vadd.f32 %v955, %v968
          %v975 = vstv %s297
          %v976 = vmul.f32 %v975, %v252
          %v977 = vmul.f32 %v975, %v253
          %v978 = vmul.f32 %v975, %v254
          %v979 = vstv %s298
          %v980 = vmul.f32 %v979, %v252
          %v981 = vmul.f32 %v979, %v253
          %v982 = vmul.f32 %v979, %v254
          %986 = vrot.lane.b32.xlu0 %v980, 127
          %v987 = vpop.permute.xlu0 %986
          %988 = vrot.lane.b32.xlu0 %v981, 127
          %v989 = vpop.permute.xlu0 %988
          %990 = vrot.lane.b32.xlu0 %v982, 127
          %v991 = vpop.permute.xlu0 %990
          %v995 = vadd.f32 %v976, %v987
          %v996 = vadd.f32 %v977, %v989
          %v997 = vadd.f32 %v978, %v991
          %v998 = vstv %s299
          %v999 = vmul.f32 %v998, %v252
          %v1000 = vmul.f32 %v998, %v253
          %v1001 = vmul.f32 %v998, %v254
          %1005 = vrot.lane.b32.xlu0 %v999, 126
          %v1006 = vpop.permute.xlu0 %1005
          %1007 = vrot.lane.b32.xlu0 %v1000, 126
          %v1008 = vpop.permute.xlu0 %1007
          %1009 = vrot.lane.b32.xlu0 %v1001, 126
          %v1010 = vpop.permute.xlu0 %1009
          %v1014 = vadd.f32 %v995, %v1006
          %v1015 = vadd.f32 %v996, %v1008
          %v1016 = vadd.f32 %v997, %v1010
          %v1017 = vstv %s300
          %v1018 = vmul.f32 %v1017, %v252
          %v1019 = vmul.f32 %v1017, %v253
          %v1020 = vmul.f32 %v1017, %v254
          %1024 = vrot.lane.b32.xlu0 %v1018, 125
          %v1025 = vpop.permute.xlu0 %1024
          %1026 = vrot.lane.b32.xlu0 %v1019, 125
          %v1027 = vpop.permute.xlu0 %1026
          %1028 = vrot.lane.b32.xlu0 %v1020, 125
          %v1029 = vpop.permute.xlu0 %1028
          %v1033 = vadd.f32 %v1014, %v1025
          %v1034 = vadd.f32 %v1015, %v1027
          %v1035 = vadd.f32 %v1016, %v1029
          %v1036 = vstv %s301
          %v1037 = vmul.f32 %v1036, %v252
          %v1038 = vmul.f32 %v1036, %v253
          %v1039 = vmul.f32 %v1036, %v254
          %1043 = vrot.lane.b32.xlu0 %v1037, 124
          %v1044 = vpop.permute.xlu0 %1043
          %1045 = vrot.lane.b32.xlu0 %v1038, 124
          %v1046 = vpop.permute.xlu0 %1045
          %1047 = vrot.lane.b32.xlu0 %v1039, 124
          %v1048 = vpop.permute.xlu0 %1047
          %v1052 = vadd.f32 %v1033, %v1044
          %v1053 = vadd.f32 %v1034, %v1046
          %v1054 = vadd.f32 %v1035, %v1048
          %v1055 = vstv %s302
          %v1056 = vmul.f32 %v1055, %v252
          %v1057 = vmul.f32 %v1055, %v253
          %v1058 = vmul.f32 %v1055, %v254
          %1062 = vrot.lane.b32.xlu0 %v1056, 123
          %v1063 = vpop.permute.xlu0 %1062
          %1064 = vrot.lane.b32.xlu0 %v1057, 123
          %v1065 = vpop.permute.xlu0 %1064
          %1066 = vrot.lane.b32.xlu0 %v1058, 123
          %v1067 = vpop.permute.xlu0 %1066
          %v1071 = vadd.f32 %v1052, %v1063
          %v1072 = vadd.f32 %v1053, %v1065
          %v1073 = vadd.f32 %v1054, %v1067
          %v1074 = vstv %s303
          %v1075 = vmul.f32 %v1074, %v252
          %v1076 = vmul.f32 %v1074, %v253
          %v1077 = vmul.f32 %v1074, %v254
          %1081 = vrot.lane.b32.xlu0 %v1075, 122
          %v1082 = vpop.permute.xlu0 %1081
          %1083 = vrot.lane.b32.xlu0 %v1076, 122
          %v1084 = vpop.permute.xlu0 %1083
          %1085 = vrot.lane.b32.xlu0 %v1077, 122
          %v1086 = vpop.permute.xlu0 %1085
          %v1090 = vadd.f32 %v1071, %v1082
          %v1091 = vadd.f32 %v1072, %v1084
          %v1092 = vadd.f32 %v1073, %v1086
          %vm1096 = vcmask 1046528
          %v1097 = vrot.slane %v500, 1
          %v1098 = vrot.slane %v501, 1
          %v1099 = vsel %vm1096, %v1097, %v1098
          %v1100 = vrot.slane %v502, 1
          %v1101 = vsel %vm1096, %v1098, %v1100
          %v1104 = vadd.f32 %v383, %v1099
          %v1105 = vadd.f32 %v384, %v1101
          %v1109 = vrot.slane %v736, 1
          %v1110 = vrot.slane %v737, 1
          %v1111 = vsel %vm1096, %v1109, %v1110
          %v1112 = vrot.slane %v738, 1
          %v1113 = vsel %vm1096, %v1110, %v1112
          %v1117 = vadd.f32 %v618, %v1111
          %v1118 = vadd.f32 %v619, %v1113
          %v1119 = vadd.f32 %v620, %v1112
          %vm1123 = vcmask 1045504
          %v1124 = vrot.slane %v1117, 2
          %v1125 = vrot.slane %v1118, 2
          %v1126 = vsel %vm1123, %v1124, %v1125
          %v1127 = vrot.slane %v1119, 2
          %v1128 = vsel %vm1123, %v1125, %v1127
          %v1131 = vadd.f32 %v1104, %v1126
          %v1132 = vadd.f32 %v1105, %v1128
          %v1136 = vrot.slane %v972, 1
          %v1137 = vrot.slane %v973, 1
          %v1138 = vsel %vm1096, %v1136, %v1137
          %v1139 = vrot.slane %v974, 1
          %v1140 = vsel %vm1096, %v1137, %v1139
          %v1144 = vadd.f32 %v854, %v1138
          %v1145 = vadd.f32 %v855, %v1140
          %v1146 = vadd.f32 %v856, %v1139
          %v1150 = vrot.slane %v1090, 2
          %v1151 = vrot.slane %v1091, 2
          %v1152 = vsel %vm1123, %v1150, %v1151
          %v1153 = vrot.slane %v1092, 2
          %v1154 = vsel %vm1123, %v1151, %v1153
          %v1158 = vadd.f32 %v1144, %v1152
          %v1159 = vadd.f32 %v1145, %v1154
          %v1160 = vadd.f32 %v1146, %v1153
          %vm1164 = vcmask 1043456
          %v1165 = vrot.slane %v1158, 4
          %v1166 = vrot.slane %v1159, 4
          %v1167 = vsel %vm1164, %v1165, %v1166
          %v1168 = vrot.slane %v1160, 4
          %v1169 = vsel %vm1164, %v1166, %v1168
          %v1172 = vadd.f32 %v1131, %v1167
          %v1173 = vadd.f32 %v1132, %v1169
          %v1174 = vxor.u32 %v1172, 2147483648
          %v1175 = vxor.u32 %v1173, 2147483648
          %v1176 = vmul.f32 %v1174, 1.442695
          %v1177 = vpow.pop %v1176
          %v1178 = vmul.f32 %v1175, 1.442695
          %v1179 = vpow.pop %v1178
          %v1180 = vadd.f32 %v1177, 1.0
          %v1181 = vadd.f32 %v1179, 1.0
          %v1182 = vrcp.pop %v1180
          %v1183 = vmul.f32 1.0, %v1182
          %v1184 = vrcp.pop %v1181
          %v1185 = vmul.f32 1.0, %v1184
          %1186 = vst.msk [vmem:[%s190] sm:$0xff] %vm200, %v1183
          %1187 = vst.msk [vmem:[%s190 + $0x8] sm:$0xff] %vm200, %v1185
        $region48: #{tpu_custom_call.1} parent=27 // pred_fallthru
          _
        %s1188 = sand.u32 %s89, 1
        %s1189 = scalar_lea.sflag [#allocation6], %s1188
        %s1190 = sand.u32 %s89, 1
        %s1191 = smul.addr %s1190, 16
        %s1192 = scalar_lea.vmem [#allocation9], %s1191
        // Predicated region
        $region49: #{tpu_custom_call.1} parent=27 // pred_check
          %p1193 = pneg %p99
        $region50: #{tpu_custom_call.1} parent=27 // pred_check_branch
          %1195 = sbr.rel (%p1193) target = $region52
        $region51: #{tpu_custom_call.1} parent=27 // pred_region
          %s1197 = ssub.s32 256, 256
          %1198 = vsyncadd %s1189, %s1197
          %s1199 = smul.addr %s24, 2
          %s1200 = smul.addr %s1199, 128
          %s1201 = scalar_lea.hbm %s2, %s1200
          %s1202 = sshll.u32 %s1192, 4
          %s1203 = int_to_ptr.vmem [resolvable:$true] %s1202
          %1208 = dma.vmem_to_hbm [thread:$0]  %s1203, 256, %s1201, %s1189, 128, 128, 8
        $region52: #{tpu_custom_call.1} parent=27 // pred_fallthru
          _
      $region28: #{tpu_custom_call.1} parent=5 // pred_fallthru
        _
      %p1209 = scmp.le.s32.totalorder 2, %s15
      // Predicated region
      $region53: #{tpu_custom_call.1} parent=5 // pred_check
        %p1210 = pneg %p1209
      $region54: #{tpu_custom_call.1} parent=5 // pred_check_branch
        %1212 = sbr.rel (%p1210) target = $region56
      $region55: #{tpu_custom_call.1} parent=5 // pred_region
        %s1213 = ssub.s32 %s15, 2
        // Predicated region
        $region57: #{tpu_custom_call.1} parent=55 // pred_check
          %p1214 = pneg %p105
        $region58: #{tpu_custom_call.1} parent=55 // pred_check_branch
          %1216 = sbr.rel (%p1214) target = $region60
        $region59: #{tpu_custom_call.1} parent=55 // pred_region
          %s1217 = sand.u32 %s90, 1
          %s1218 = scalar_lea.sflag [#allocation6], %s1217
          %s1219 = sand.u32 %s90, 1
          %s1220 = smul.addr %s1219, 16
          %s1221 = scalar_lea.vmem [#allocation9], %s1220
          %1222 = dma.done %s1218, 256
        $region60: #{tpu_custom_call.1} parent=55 // pred_fallthru
          _
      $region56: #{tpu_custom_call.1} parent=5 // pred_fallthru
        _
    $region6: #{tpu_custom_call.1} parent=1 // loop_footer
      %s19 = sadd.s32 1, %s15
    $region7: #{tpu_custom_call.1} parent=1 // loop_footer_branch
      %14 = sbr.rel target = $region3
    $region8: #{tpu_custom_call.1} parent=1 // loop_exit
      _
    %1223 = vsyncpa [#allocation5], 1
    %s1224 = scalar_lea.sflag [#allocation5], 1
    %1225 = vsyncpa %s1224, 1
    %1226 = vsyncpa [#allocation6], 1
    %s1227 = scalar_lea.sflag [#allocation6], 1
    %1228 = vsyncpa %s1227, 1
    %1229 = vsyncpa [#allocation7], 1
    %s1230 = scalar_lea.sflag [#allocation7], 1
    %1231 = vsyncpa %s1230, 1

</llo_original>
